<compile_context>
chip_gen: v7x
topology: tpu7x:2x2x1
jax: 0.10.0
libtpu: 0.0.40
codegen_flags: <defaults>
</compile_context>

<pallas_src>
import jax
import jax.numpy as jnp
from jax import lax
from jax.experimental import pallas as pl
from jax.experimental.pallas import tpu as pltpu

# Scoped VMEM limit: above v5e's 16 MiB default, equal to v6e/v7x defaults and
# well inside v7x's 64 MiB physical VMEM.  Working-set budget leaves headroom.
_VMEM_LIMIT_BYTES = 32 * 1024 * 1024
_VMEM_WORKSET_BYTES = 28 * 1024 * 1024


def _round_up(a, b):
    return ((a + b - 1) // b) * b


# --------------------------------------------------------------------------- #
# Step 1: one-shot Gauss-Jordan inversion of W^T  ->  W^{-T}
# --------------------------------------------------------------------------- #
def _invert_kernel(wt_ref, invwt_ref, m_ref):
    """Gauss-Jordan on the augmented matrix [W^T | I] held in VMEM scratch.

    No partial pivoting: W is assumed well-conditioned (as in the reference
    module's usage).  Exact reciprocal for the pivot (approx EUP reciprocal
    would compound error over D elimination steps).
    """
    D = wt_ref.shape[0]

    # Small, hoisted iotas only (no full (D, 2D) int32 constants kept live).
    rows = lax.broadcasted_iota(jnp.int32, (D, 1), 0)        # (D, 1)
    cols_d = lax.broadcasted_iota(jnp.int32, (1, D), 1)      # (1, D)
    cols_2d = lax.broadcasted_iota(jnp.int32, (1, 2 * D), 1)  # (1, 2D)

    eye = (rows == cols_d).astype(jnp.float32)                # (D, D)
    m_ref[...] = jnp.concatenate(
        [wt_ref[...].astype(jnp.float32), eye], axis=1)       # [W^T | I]

    def step(k, carry):
        # Pivot row via dynamic sublane slice (no full-matrix masked reduce).
        row_k = m_ref[pl.ds(k, 1), :]                                  # (1, 2D)
        piv = jnp.sum(jnp.where(cols_2d == k, row_k, 0.0))             # scalar
        row_scaled = row_k * (1.0 / piv)                               # (1, 2D)

        # Elimination factors = column k of the *left* block only.
        left = m_ref[:, :D]                                            # (D, D)
        col_k = jnp.sum(jnp.where(cols_d == k, left, 0.0),
                        axis=1, keepdims=True)                         # (D, 1)
        factor = jnp.where(rows == k, 0.0, col_k)                      # (D, 1)

        # Rank-1 elimination update; pivot row untouched (factor==0 there),
        # then overwritten with its scaled version via a dynamic store.
        m_ref[...] = m_ref[...] - factor * row_scaled
        m_ref[pl.ds(k, 1), :] = row_scaled
        return carry

    # Fully unroll for small D (gives the LLO scheduler slack on the fully
    # serial elimination chain); keep the loop rolled for larger D.
    lax.fori_loop(0, D, step, 0, unroll=True if D <= 64 else False)

    # Right block == (W^T)^{-1} == W^{-T}.
    invwt_ref[...] = m_ref[:, D:].astype(invwt_ref.dtype)


# --------------------------------------------------------------------------- #
# Step 2: streamed MXU apply   out = x @ W^{-T}   (canonical contraction)
# --------------------------------------------------------------------------- #
def _apply_kernel(invwt_ref, x_ref, out_ref):
    out_ref[...] = jnp.dot(
        x_ref[...], invwt_ref[...],
        preferred_element_type=jnp.float32,
    ).astype(out_ref.dtype)


def _pick_tile_n(n_rows, d_eff, x_itemsize):
    """Largest N tile whose pipelined working set fits the VMEM budget.

    Working set = resident W^{-T} (conservatively 2 pipeline buffers, since we
    do not rely on pl.Buffered(1) single-buffering) + 2 x-tile buffers +
    2 f32 out-tile buffers.
    """
    fixed = 2 * d_eff * d_eff * x_itemsize
    avail = max(_VMEM_WORKSET_BYTES - fixed, 0)
    tile = 8
    for cand in (1024, 512, 256, 128, 64, 32, 16, 8):
        need = 2 * cand * d_eff * x_itemsize + 2 * cand * d_eff * 4
        if need <= avail:
            tile = cand
            break
    # Never exceed what N actually needs; stay a multiple of 8 sublanes.
    tile = min(tile, _round_up(max(n_rows, 1), 8))
    return tile


def inverted_u_layer(x, inverted_weight, *, use_bf16=False):
    """x: (N, D), inverted_weight W: (D, D)  ->  solve(W, x.T).T  == x @ W^{-T}."""
    N, D = x.shape
    assert inverted_weight.shape == (D, D)
    x = x.astype(jnp.float32)
    # Pre-transpose once in the wrapper: inverting W^T yields W^{-T} directly,
    # so the per-tile matmul below is a canonical (K, N)-layout contraction.
    wt = inverted_weight.astype(jnp.float32).T

    invwt = pl.pallas_call(
        _invert_kernel,
        out_shape=jax.ShapeDtypeStruct((D, D), jnp.float32),
        grid=(1,),
        in_specs=[pl.BlockSpec((D, D), lambda i: (0, 0))],
        out_specs=pl.BlockSpec((D, D), lambda i: (0, 0)),
        scratch_shapes=[pltpu.VMEM((D, 2 * D), jnp.float32)],
        compiler_params=pltpu.CompilerParams(
            dimension_semantics=("arbitrary",),
            vmem_limit_bytes=_VMEM_LIMIT_BYTES),
    )(wt)

    # Small-D lane packing: fold g rows into one 128-lane row and use a
    # block-diagonal replication of W^{-T}, so output stores are full-lane.
    g = 1
    if D <= 64 and 128 % D == 0:
        g = 128 // D
        while g > 1 and N % g:
            g //= 2
    if g > 1:
        x_p = x.reshape(N // g, g * D)
        w_p = jnp.kron(jnp.eye(g, dtype=jnp.float32), invwt)
    else:
        x_p, w_p = x, invwt
    n_rows, d_eff = x_p.shape

    # Optional bf16 MXU path (f32 accumulation kept); default off to match the
    # solve semantics as closely as possible.
    mm_dtype = jnp.bfloat16 if use_bf16 else jnp.float32
    x_p = x_p.astype(mm_dtype)
    w_p = w_p.astype(mm_dtype)

    tile_n = _pick_tile_n(n_rows, d_eff, jnp.dtype(mm_dtype).itemsize)
    n_pad = _round_up(n_rows, tile_n)
    if n_pad != n_rows:
        # Zero-pad the ragged tail instead of a full-extent fallback block.
        x_p = jnp.pad(x_p, ((0, n_pad - n_rows), (0, 0)))

    out_p = pl.pallas_call(
        _apply_kernel,
        out_shape=jax.ShapeDtypeStruct((n_pad, d_eff), jnp.float32),
        grid=(n_pad // tile_n,),
        in_specs=[
            # Resident W^{-T}: constant index_map -> fetched once.
            # TODO(synk): single-buffer via pipeline_mode=pl.Buffered(1) once
            # confirmed supported on the target JAX version; accounted for as
            # two buffers in _pick_tile_n instead.
            pl.BlockSpec((d_eff, d_eff), lambda i: (0, 0)),
            pl.BlockSpec((tile_n, d_eff), lambda i: (i, 0)),   # x tile
        ],
        out_specs=pl.BlockSpec((tile_n, d_eff), lambda i: (i, 0)),  # lane-dense
        compiler_params=pltpu.CompilerParams(
            dimension_semantics=("parallel",),
            vmem_limit_bytes=_VMEM_LIMIT_BYTES),
    )(w_p, x_p)

    if n_pad != n_rows:
        out_p = out_p[:n_rows]
    return out_p.reshape(N, D)


if __name__ == "__main__":
    key = jax.random.PRNGKey(0)
    k_w, k_x = jax.random.split(key)

    N, D = 8, 16  # small shapes: batch=8, feature dim=16

    # Deterministic, well-conditioned, invertible "inverted_weight" (D, D).
    A = jax.random.normal(k_w, (D, D), dtype=jnp.float32)
    inverted_weight = A @ A.T + D * jnp.eye(D, dtype=jnp.float32)

    x_in = jax.random.normal(k_x, (N, D), dtype=jnp.float32)

    out = inverted_u_layer(x_in, inverted_weight)
    out = jax.block_until_ready(out)

    # Reference: x = solve(W, x^T)^T
    ref = jnp.linalg.solve(inverted_weight, x_in.T).T
    assert out.shape == (N, D)
    assert jnp.allclose(out, ref, atol=1e-3, rtol=1e-3), (
        f"max abs err {jnp.max(jnp.abs(out - ref))}")

    print("KERNEL_OK")
</pallas_src>

<mosaic_0001>
module attributes {stable_mosaic.version = 11 : i64} {
  func.func @_invert_kernel(%arg0: i32, %arg1: memref<16x16xf32, #tpu.memory_space<vmem>>, %arg2: memref<16x16xf32, #tpu.memory_space<vmem>>, %arg3: memref<16x32xf32, #tpu.memory_space<vmem>>) attributes {dimension_semantics = [#tpu.dimension_semantics<arbitrary>], iteration_bounds = array<i64: 1>, scalar_prefetch = 0 : i64, scratch_operands = 1 : i64, tpu.core_type = #tpu.core_type<tc>, window_params = [{pipeline_mode = #tpu.pipeline_mode<synchronous>, transform_indices = @transform_0, window_bounds = array<i64: 16, 16>}, {pipeline_mode = #tpu.pipeline_mode<synchronous>, transform_indices = @transform_1, window_bounds = array<i64: 16, 16>}]} {
    %0 = tpu.iota {dimensions = array<i32: 0>} : vector<16x1xi32>
    %1 = tpu.iota {dimensions = array<i32: 1>} : vector<1x16xi32>
    %2 = tpu.iota {dimensions = array<i32: 1>} : vector<1x32xi32>
    %3 = vector.broadcast %0 : vector<16x1xi32> to vector<16x16xi32>
    %4 = vector.broadcast %1 : vector<1x16xi32> to vector<16x16xi32>
    %5 = arith.cmpi eq, %3, %4 : vector<16x16xi32>
    %6 = arith.extui %5 : vector<16x16xi1> to vector<16x16xi32>
    %7 = arith.sitofp %6 : vector<16x16xi32> to vector<16x16xf32>
    %c0 = arith.constant 0 : index
    %c0_0 = arith.constant 0 : index
    %8 = vector.load %arg1[%c0, %c0_0] : memref<16x16xf32, #tpu.memory_space<vmem>>, vector<16x16xf32>
    %9 = tpu.concatenate %8, %7 in 1 : vector<16x16xf32>, vector<16x16xf32> -> vector<16x32xf32>
    %c0_1 = arith.constant 0 : index
    %c0_2 = arith.constant 0 : index
    %10 = vector.load %arg3[%c0_1, %c0_2] : memref<16x32xf32, #tpu.memory_space<vmem>>, vector<16x32xf32>
    tpu.vector_store %arg3[%c0_1, %c0_2], %9 {strides = array<i32>} : memref<16x32xf32, #tpu.memory_space<vmem>>, vector<16x32xf32>,
    %c0_i32 = arith.constant 0 : i32
    %11 = arith.index_cast %c0_i32 : i32 to index
    %c0_3 = arith.constant 0 : index
    %12 = vector.load %arg3[%11, %c0_3] : memref<16x32xf32, #tpu.memory_space<vmem>>, vector<1x32xf32>
    %13 = vector.broadcast %c0_i32 : i32 to vector<1x32xi32>
    %14 = arith.cmpi eq, %2, %13 : vector<1x32xi32>
    %cst = arith.constant 0.000000e+00 : f32
    %15 = vector.broadcast %cst : f32 to vector<1x32xf32>
    %16 = arith.select %14, %12, %15 : vector<1x32xi1>, vector<1x32xf32>
    %17 = vector.shape_cast %16 : vector<1x32xf32> to vector<1x1x32xf32>
    %cst_4 = arith.constant dense<0.000000e+00> : vector<1xf32>
    %18 = vector.multi_reduction <add>, %17, %cst_4 [1, 2] : vector<1x1x32xf32> to vector<1xf32>
    %19 = vector.shape_cast %18 : vector<1xf32> to vector<1x1x1xf32>
    %20 = vector.extract %19[0, 0, 0] : f32 from vector<1x1x1xf32>
    %cst_5 = arith.constant 1.000000e+00 : f32
    %21 = arith.divf %cst_5, %20 : f32
    %22 = vector.broadcast %21 : f32 to vector<1x32xf32>
    %23 = arith.mulf %12, %22 : vector<1x32xf32>
    %c0_6 = arith.constant 0 : index
    %c0_7 = arith.constant 0 : index
    %24 = vector.load %arg3[%c0_6, %c0_7] : memref<16x32xf32, #tpu.memory_space<vmem>>, vector<16x16xf32>
    %25 = vector.broadcast %c0_i32 : i32 to vector<1x16xi32>
    %26 = arith.cmpi eq, %1, %25 : vector<1x16xi32>
    %cst_8 = arith.constant 0.000000e+00 : f32
    %27 = vector.shape_cast %26 : vector<1x16xi1> to vector<1x16xi1>
    %28 = vector.broadcast %27 : vector<1x16xi1> to vector<16x16xi1>
    %29 = vector.broadcast %cst_8 : f32 to vector<16x16xf32>
    %30 = arith.select %28, %24, %29 : vector<16x16xi1>, vector<16x16xf32>
    %cst_9 = arith.constant dense<0.000000e+00> : vector<16xf32>
    %31 = vector.multi_reduction <add>, %30, %cst_9 [1] : vector<16x16xf32> to vector<16xf32>
    %32 = vector.shape_cast %31 : vector<16xf32> to vector<16x1xf32>
    %33 = vector.broadcast %c0_i32 : i32 to vector<16x1xi32>
    %34 = arith.cmpi eq, %0, %33 : vector<16x1xi32>
    %cst_10 = arith.constant 0.000000e+00 : f32
    %35 = vector.broadcast %cst_10 : f32 to vector<16x1xf32>
    %36 = arith.select %34, %35, %32 : vector<16x1xi1>, vector<16x1xf32>
    %c0_11 = arith.constant 0 : index
    %c0_12 = arith.constant 0 : index
    %37 = vector.load %arg3[%c0_11, %c0_12] : memref<16x32xf32, #tpu.memory_space<vmem>>, vector<16x32xf32>
    %38 = vector.broadcast %36 : vector<16x1xf32> to vector<16x32xf32>
    %39 = vector.broadcast %23 : vector<1x32xf32> to vector<16x32xf32>
    %40 = arith.mulf %38, %39 : vector<16x32xf32>
    %41 = arith.subf %37, %40 : vector<16x32xf32>
    %c0_13 = arith.constant 0 : index
    %c0_14 = arith.constant 0 : index
    %42 = vector.load %arg3[%c0_13, %c0_14] : memref<16x32xf32, #tpu.memory_space<vmem>>, vector<16x32xf32>
    tpu.vector_store %arg3[%c0_13, %c0_14], %41 {strides = array<i32>} : memref<16x32xf32, #tpu.memory_space<vmem>>, vector<16x32xf32>,
    %43 = arith.index_cast %c0_i32 : i32 to index
    %c0_15 = arith.constant 0 : index
    %44 = vector.load %arg3[%43, %c0_15] : memref<16x32xf32, #tpu.memory_space<vmem>>, vector<1x32xf32>
    tpu.vector_store %arg3[%43, %c0_15], %23 {strides = array<i32>} : memref<16x32xf32, #tpu.memory_space<vmem>>, vector<1x32xf32>,
    %c1_i32 = arith.constant 1 : i32
    %45 = arith.index_cast %c1_i32 : i32 to index
    %c0_16 = arith.constant 0 : index
    %46 = vector.load %arg3[%45, %c0_16] : memref<16x32xf32, #tpu.memory_space<vmem>>, vector<1x32xf32>
    %47 = vector.broadcast %c1_i32 : i32 to vector<1x32xi32>
    %48 = arith.cmpi eq, %2, %47 : vector<1x32xi32>
    %cst_17 = arith.constant 0.000000e+00 : f32
    %49 = vector.broadcast %cst_17 : f32 to vector<1x32xf32>
    %50 = arith.select %48, %46, %49 : vector<1x32xi1>, vector<1x32xf32>
    %51 = vector.shape_cast %50 : vector<1x32xf32> to vector<1x1x32xf32>
    %cst_18 = arith.constant dense<0.000000e+00> : vector<1xf32>
    %52 = vector.multi_reduction <add>, %51, %cst_18 [1, 2] : vector<1x1x32xf32> to vector<1xf32>
    %53 = vector.shape_cast %52 : vector<1xf32> to vector<1x1x1xf32>
    %54 = vector.extract %53[0, 0, 0] : f32 from vector<1x1x1xf32>
    %cst_19 = arith.constant 1.000000e+00 : f32
    %55 = arith.divf %cst_19, %54 : f32
    %56 = vector.broadcast %55 : f32 to vector<1x32xf32>
    %57 = arith.mulf %46, %56 : vector<1x32xf32>
    %c0_20 = arith.constant 0 : index
    %c0_21 = arith.constant 0 : index
    %58 = vector.load %arg3[%c0_20, %c0_21] : memref<16x32xf32, #tpu.memory_space<vmem>>, vector<16x16xf32>
    %59 = vector.broadcast %c1_i32 : i32 to vector<1x16xi32>
    %60 = arith.cmpi eq, %1, %59 : vector<1x16xi32>
    %cst_22 = arith.constant 0.000000e+00 : f32
    %61 = vector.shape_cast %60 : vector<1x16xi1> to vector<1x16xi1>
    %62 = vector.broadcast %61 : vector<1x16xi1> to vector<16x16xi1>
    %63 = vector.broadcast %cst_22 : f32 to vector<16x16xf32>
    %64 = arith.select %62, %58, %63 : vector<16x16xi1>, vector<16x16xf32>
    %cst_23 = arith.constant dense<0.000000e+00> : vector<16xf32>
    %65 = vector.multi_reduction <add>, %64, %cst_23 [1] : vector<16x16xf32> to vector<16xf32>
    %66 = vector.shape_cast %65 : vector<16xf32> to vector<16x1xf32>
    %67 = vector.broadcast %c1_i32 : i32 to vector<16x1xi32>
    %68 = arith.cmpi eq, %0, %67 : vector<16x1xi32>
    %cst_24 = arith.constant 0.000000e+00 : f32
    %69 = vector.broadcast %cst_24 : f32 to vector<16x1xf32>
    %70 = arith.select %68, %69, %66 : vector<16x1xi1>, vector<16x1xf32>
    %c0_25 = arith.constant 0 : index
    %c0_26 = arith.constant 0 : index
    %71 = vector.load %arg3[%c0_25, %c0_26] : memref<16x32xf32, #tpu.memory_space<vmem>>, vector<16x32xf32>
    %72 = vector.broadcast %70 : vector<16x1xf32> to vector<16x32xf32>
    %73 = vector.broadcast %57 : vector<1x32xf32> to vector<16x32xf32>
    %74 = arith.mulf %72, %73 : vector<16x32xf32>
    %75 = arith.subf %71, %74 : vector<16x32xf32>
    %c0_27 = arith.constant 0 : index
    %c0_28 = arith.constant 0 : index
    %76 = vector.load %arg3[%c0_27, %c0_28] : memref<16x32xf32, #tpu.memory_space<vmem>>, vector<16x32xf32>
    tpu.vector_store %arg3[%c0_27, %c0_28], %75 {strides = array<i32>} : memref<16x32xf32, #tpu.memory_space<vmem>>, vector<16x32xf32>,
    %77 = arith.index_cast %c1_i32 : i32 to index
    %c0_29 = arith.constant 0 : index
    %78 = vector.load %arg3[%77, %c0_29] : memref<16x32xf32, #tpu.memory_space<vmem>>, vector<1x32xf32>
    tpu.vector_store %arg3[%77, %c0_29], %57 {strides = array<i32>} : memref<16x32xf32, #tpu.memory_space<vmem>>, vector<1x32xf32>,
    %c2_i32 = arith.constant 2 : i32
    %79 = arith.index_cast %c2_i32 : i32 to index
    %c0_30 = arith.constant 0 : index
    %80 = vector.load %arg3[%79, %c0_30] : memref<16x32xf32, #tpu.memory_space<vmem>>, vector<1x32xf32>
    %81 = vector.broadcast %c2_i32 : i32 to vector<1x32xi32>
    %82 = arith.cmpi eq, %2, %81 : vector<1x32xi32>
    %cst_31 = arith.constant 0.000000e+00 : f32
    %83 = vector.broadcast %cst_31 : f32 to vector<1x32xf32>
    %84 = arith.select %82, %80, %83 : vector<1x32xi1>, vector<1x32xf32>
    %85 = vector.shape_cast %84 : vector<1x32xf32> to vector<1x1x32xf32>
    %cst_32 = arith.constant dense<0.000000e+00> : vector<1xf32>
    %86 = vector.multi_reduction <add>, %85, %cst_32 [1, 2] : vector<1x1x32xf32> to vector<1xf32>
    %87 = vector.shape_cast %86 : vector<1xf32> to vector<1x1x1xf32>
    %88 = vector.extract %87[0, 0, 0] : f32 from vector<1x1x1xf32>
    %cst_33 = arith.constant 1.000000e+00 : f32
    %89 = arith.divf %cst_33, %88 : f32
    %90 = vector.broadcast %89 : f32 to vector<1x32xf32>
    %91 = arith.mulf %80, %90 : vector<1x32xf32>
    %c0_34 = arith.constant 0 : index
    %c0_35 = arith.constant 0 : index
    %92 = vector.load %arg3[%c0_34, %c0_35] : memref<16x32xf32, #tpu.memory_space<vmem>>, vector<16x16xf32>
    %93 = vector.broadcast %c2_i32 : i32 to vector<1x16xi32>
    %94 = arith.cmpi eq, %1, %93 : vector<1x16xi32>
    %cst_36 = arith.constant 0.000000e+00 : f32
    %95 = vector.shape_cast %94 : vector<1x16xi1> to vector<1x16xi1>
    %96 = vector.broadcast %95 : vector<1x16xi1> to vector<16x16xi1>
    %97 = vector.broadcast %cst_36 : f32 to vector<16x16xf32>
    %98 = arith.select %96, %92, %97 : vector<16x16xi1>, vector<16x16xf32>
    %cst_37 = arith.constant dense<0.000000e+00> : vector<16xf32>
    %99 = vector.multi_reduction <add>, %98, %cst_37 [1] : vector<16x16xf32> to vector<16xf32>
    %100 = vector.shape_cast %99 : vector<16xf32> to vector<16x1xf32>
    %101 = vector.broadcast %c2_i32 : i32 to vector<16x1xi32>
    %102 = arith.cmpi eq, %0, %101 : vector<16x1xi32>
    %cst_38 = arith.constant 0.000000e+00 : f32
    %103 = vector.broadcast %cst_38 : f32 to vector<16x1xf32>
    %104 = arith.select %102, %103, %100 : vector<16x1xi1>, vector<16x1xf32>
    %c0_39 = arith.constant 0 : index
    %c0_40 = arith.constant 0 : index
    %105 = vector.load %arg3[%c0_39, %c0_40] : memref<16x32xf32, #tpu.memory_space<vmem>>, vector<16x32xf32>
    %106 = vector.broadcast %104 : vector<16x1xf32> to vector<16x32xf32>
    %107 = vector.broadcast %91 : vector<1x32xf32> to vector<16x32xf32>
    %108 = arith.mulf %106, %107 : vector<16x32xf32>
    %109 = arith.subf %105, %108 : vector<16x32xf32>
    %c0_41 = arith.constant 0 : index
    %c0_42 = arith.constant 0 : index
    %110 = vector.load %arg3[%c0_41, %c0_42] : memref<16x32xf32, #tpu.memory_space<vmem>>, vector<16x32xf32>
    tpu.vector_store %arg3[%c0_41, %c0_42], %109 {strides = array<i32>} : memref<16x32xf32, #tpu.memory_space<vmem>>, vector<16x32xf32>,
    %111 = arith.index_cast %c2_i32 : i32 to index
    %c0_43 = arith.constant 0 : index
    %112 = vector.load %arg3[%111, %c0_43] : memref<16x32xf32, #tpu.memory_space<vmem>>, vector<1x32xf32>
    tpu.vector_store %arg3[%111, %c0_43], %91 {strides = array<i32>} : memref<16x32xf32, #tpu.memory_space<vmem>>, vector<1x32xf32>,
    %c3_i32 = arith.constant 3 : i32
    %113 = arith.index_cast %c3_i32 : i32 to index
    %c0_44 = arith.constant 0 : index
    %114 = vector.load %arg3[%113, %c0_44] : memref<16x32xf32, #tpu.memory_space<vmem>>, vector<1x32xf32>
    %115 = vector.broadcast %c3_i32 : i32 to vector<1x32xi32>
    %116 = arith.cmpi eq, %2, %115 : vector<1x32xi32>
    %cst_45 = arith.constant 0.000000e+00 : f32
    %117 = vector.broadcast %cst_45 : f32 to vector<1x32xf32>
    %118 = arith.select %116, %114, %117 : vector<1x32xi1>, vector<1x32xf32>
    %119 = vector.shape_cast %118 : vector<1x32xf32> to vector<1x1x32xf32>
    %cst_46 = arith.constant dense<0.000000e+00> : vector<1xf32>
    %120 = vector.multi_reduction <add>, %119, %cst_46 [1, 2] : vector<1x1x32xf32> to vector<1xf32>
    %121 = vector.shape_cast %120 : vector<1xf32> to vector<1x1x1xf32>
    %122 = vector.extract %121[0, 0, 0] : f32 from vector<1x1x1xf32>
    %cst_47 = arith.constant 1.000000e+00 : f32
    %123 = arith.divf %cst_47, %122 : f32
    %124 = vector.broadcast %123 : f32 to vector<1x32xf32>
    %125 = arith.mulf %114, %124 : vector<1x32xf32>
    %c0_48 = arith.constant 0 : index
    %c0_49 = arith.constant 0 : index
    %126 = vector.load %arg3[%c0_48, %c0_49] : memref<16x32xf32, #tpu.memory_space<vmem>>, vector<16x16xf32>
    %127 = vector.broadcast %c3_i32 : i32 to vector<1x16xi32>
    %128 = arith.cmpi eq, %1, %127 : vector<1x16xi32>
    %cst_50 = arith.constant 0.000000e+00 : f32
    %129 = vector.shape_cast %128 : vector<1x16xi1> to vector<1x16xi1>
    %130 = vector.broadcast %129 : vector<1x16xi1> to vector<16x16xi1>
    %131 = vector.broadcast %cst_50 : f32 to vector<16x16xf32>
    %132 = arith.select %130, %126, %131 : vector<16x16xi1>, vector<16x16xf32>
    %cst_51 = arith.constant dense<0.000000e+00> : vector<16xf32>
    %133 = vector.multi_reduction <add>, %132, %cst_51 [1] : vector<16x16xf32> to vector<16xf32>
    %134 = vector.shape_cast %133 : vector<16xf32> to vector<16x1xf32>
    %135 = vector.broadcast %c3_i32 : i32 to vector<16x1xi32>
    %136 = arith.cmpi eq, %0, %135 : vector<16x1xi32>
    %cst_52 = arith.constant 0.000000e+00 : f32
    %137 = vector.broadcast %cst_52 : f32 to vector<16x1xf32>
    %138 = arith.select %136, %137, %134 : vector<16x1xi1>, vector<16x1xf32>
    %c0_53 = arith.constant 0 : index
    %c0_54 = arith.constant 0 : index
    %139 = vector.load %arg3[%c0_53, %c0_54] : memref<16x32xf32, #tpu.memory_space<vmem>>, vector<16x32xf32>
    %140 = vector.broadcast %138 : vector<16x1xf32> to vector<16x32xf32>
    %141 = vector.broadcast %125 : vector<1x32xf32> to vector<16x32xf32>
    %142 = arith.mulf %140, %141 : vector<16x32xf32>
    %143 = arith.subf %139, %142 : vector<16x32xf32>
    %c0_55 = arith.constant 0 : index
    %c0_56 = arith.constant 0 : index
    %144 = vector.load %arg3[%c0_55, %c0_56] : memref<16x32xf32, #tpu.memory_space<vmem>>, vector<16x32xf32>
    tpu.vector_store %arg3[%c0_55, %c0_56], %143 {strides = array<i32>} : memref<16x32xf32, #tpu.memory_space<vmem>>, vector<16x32xf32>,
    %145 = arith.index_cast %c3_i32 : i32 to index
    %c0_57 = arith.constant 0 : index
    %146 = vector.load %arg3[%145, %c0_57] : memref<16x32xf32, #tpu.memory_space<vmem>>, vector<1x32xf32>
    tpu.vector_store %arg3[%145, %c0_57], %125 {strides = array<i32>} : memref<16x32xf32, #tpu.memory_space<vmem>>, vector<1x32xf32>,
    %c4_i32 = arith.constant 4 : i32
    %147 = arith.index_cast %c4_i32 : i32 to index
    %c0_58 = arith.constant 0 : index
    %148 = vector.load %arg3[%147, %c0_58] : memref<16x32xf32, #tpu.memory_space<vmem>>, vector<1x32xf32>
    %149 = vector.broadcast %c4_i32 : i32 to vector<1x32xi32>
    %150 = arith.cmpi eq, %2, %149 : vector<1x32xi32>
    %cst_59 = arith.constant 0.000000e+00 : f32
    %151 = vector.broadcast %cst_59 : f32 to vector<1x32xf32>
    %152 = arith.select %150, %148, %151 : vector<1x32xi1>, vector<1x32xf32>
    %153 = vector.shape_cast %152 : vector<1x32xf32> to vector<1x1x32xf32>
    %cst_60 = arith.constant dense<0.000000e+00> : vector<1xf32>
    %154 = vector.multi_reduction <add>, %153, %cst_60 [1, 2] : vector<1x1x32xf32> to vector<1xf32>
    %155 = vector.shape_cast %154 : vector<1xf32> to vector<1x1x1xf32>
    %156 = vector.extract %155[0, 0, 0] : f32 from vector<1x1x1xf32>
    %cst_61 = arith.constant 1.000000e+00 : f32
    %157 = arith.divf %cst_61, %156 : f32
    %158 = vector.broadcast %157 : f32 to vector<1x32xf32>
    %159 = arith.mulf %148, %158 : vector<1x32xf32>
    %c0_62 = arith.constant 0 : index
    %c0_63 = arith.constant 0 : index
    %160 = vector.load %arg3[%c0_62, %c0_63] : memref<16x32xf32, #tpu.memory_space<vmem>>, vector<16x16xf32>
    %161 = vector.broadcast %c4_i32 : i32 to vector<1x16xi32>
    %162 = arith.cmpi eq, %1, %161 : vector<1x16xi32>
    %cst_64 = arith.constant 0.000000e+00 : f32
    %163 = vector.shape_cast %162 : vector<1x16xi1> to vector<1x16xi1>
    %164 = vector.broadcast %163 : vector<1x16xi1> to vector<16x16xi1>
    %165 = vector.broadcast %cst_64 : f32 to vector<16x16xf32>
    %166 = arith.select %164, %160, %165 : vector<16x16xi1>, vector<16x16xf32>
    %cst_65 = arith.constant dense<0.000000e+00> : vector<16xf32>
    %167 = vector.multi_reduction <add>, %166, %cst_65 [1] : vector<16x16xf32> to vector<16xf32>
    %168 = vector.shape_cast %167 : vector<16xf32> to vector<16x1xf32>
    %169 = vector.broadcast %c4_i32 : i32 to vector<16x1xi32>
    %170 = arith.cmpi eq, %0, %169 : vector<16x1xi32>
    %cst_66 = arith.constant 0.000000e+00 : f32
    %171 = vector.broadcast %cst_66 : f32 to vector<16x1xf32>
    %172 = arith.select %170, %171, %168 : vector<16x1xi1>, vector<16x1xf32>
    %c0_67 = arith.constant 0 : index
    %c0_68 = arith.constant 0 : index
    %173 = vector.load %arg3[%c0_67, %c0_68] : memref<16x32xf32, #tpu.memory_space<vmem>>, vector<16x32xf32>
    %174 = vector.broadcast %172 : vector<16x1xf32> to vector<16x32xf32>
    %175 = vector.broadcast %159 : vector<1x32xf32> to vector<16x32xf32>
    %176 = arith.mulf %174, %175 : vector<16x32xf32>
    %177 = arith.subf %173, %176 : vector<16x32xf32>
    %c0_69 = arith.constant 0 : index
    %c0_70 = arith.constant 0 : index
    %178 = vector.load %arg3[%c0_69, %c0_70] : memref<16x32xf32, #tpu.memory_space<vmem>>, vector<16x32xf32>
    tpu.vector_store %arg3[%c0_69, %c0_70], %177 {strides = array<i32>} : memref<16x32xf32, #tpu.memory_space<vmem>>, vector<16x32xf32>,
    %179 = arith.index_cast %c4_i32 : i32 to index
    %c0_71 = arith.constant 0 : index
    %180 = vector.load %arg3[%179, %c0_71] : memref<16x32xf32, #tpu.memory_space<vmem>>, vector<1x32xf32>
    tpu.vector_store %arg3[%179, %c0_71], %159 {strides = array<i32>} : memref<16x32xf32, #tpu.memory_space<vmem>>, vector<1x32xf32>,
    %c5_i32 = arith.constant 5 : i32
    %181 = arith.index_cast %c5_i32 : i32 to index
    %c0_72 = arith.constant 0 : index
    %182 = vector.load %arg3[%181, %c0_72] : memref<16x32xf32, #tpu.memory_space<vmem>>, vector<1x32xf32>
    %183 = vector.broadcast %c5_i32 : i32 to vector<1x32xi32>
    %184 = arith.cmpi eq, %2, %183 : vector<1x32xi32>
    %cst_73 = arith.constant 0.000000e+00 : f32
    %185 = vector.broadcast %cst_73 : f32 to vector<1x32xf32>
    %186 = arith.select %184, %182, %185 : vector<1x32xi1>, vector<1x32xf32>
    %187 = vector.shape_cast %186 : vector<1x32xf32> to vector<1x1x32xf32>
    %cst_74 = arith.constant dense<0.000000e+00> : vector<1xf32>
    %188 = vector.multi_reduction <add>, %187, %cst_74 [1, 2] : vector<1x1x32xf32> to vector<1xf32>
    %189 = vector.shape_cast %188 : vector<1xf32> to vector<1x1x1xf32>
    %190 = vector.extract %189[0, 0, 0] : f32 from vector<1x1x1xf32>
    %cst_75 = arith.constant 1.000000e+00 : f32
    %191 = arith.divf %cst_75, %190 : f32
    %192 = vector.broadcast %191 : f32 to vector<1x32xf32>
    %193 = arith.mulf %182, %192 : vector<1x32xf32>
    %c0_76 = arith.constant 0 : index
    %c0_77 = arith.constant 0 : index
    %194 = vector.load %arg3[%c0_76, %c0_77] : memref<16x32xf32, #tpu.memory_space<vmem>>, vector<16x16xf32>
    %195 = vector.broadcast %c5_i32 : i32 to vector<1x16xi32>
    %196 = arith.cmpi eq, %1, %195 : vector<1x16xi32>
    %cst_78 = arith.constant 0.000000e+00 : f32
    %197 = vector.shape_cast %196 : vector<1x16xi1> to vector<1x16xi1>
    %198 = vector.broadcast %197 : vector<1x16xi1> to vector<16x16xi1>
    %199 = vector.broadcast %cst_78 : f32 to vector<16x16xf32>
    %200 = arith.select %198, %194, %199 : vector<16x16xi1>, vector<16x16xf32>
    %cst_79 = arith.constant dense<0.000000e+00> : vector<16xf32>
    %201 = vector.multi_reduction <add>, %200, %cst_79 [1] : vector<16x16xf32> to vector<16xf32>
    %202 = vector.shape_cast %201 : vector<16xf32> to vector<16x1xf32>
    %203 = vector.broadcast %c5_i32 : i32 to vector<16x1xi32>
    %204 = arith.cmpi eq, %0, %203 : vector<16x1xi32>
    %cst_80 = arith.constant 0.000000e+00 : f32
    %205 = vector.broadcast %cst_80 : f32 to vector<16x1xf32>
    %206 = arith.select %204, %205, %202 : vector<16x1xi1>, vector<16x1xf32>
    %c0_81 = arith.constant 0 : index
    %c0_82 = arith.constant 0 : index
    %207 = vector.load %arg3[%c0_81, %c0_82] : memref<16x32xf32, #tpu.memory_space<vmem>>, vector<16x32xf32>
    %208 = vector.broadcast %206 : vector<16x1xf32> to vector<16x32xf32>
    %209 = vector.broadcast %193 : vector<1x32xf32> to vector<16x32xf32>
    %210 = arith.mulf %208, %209 : vector<16x32xf32>
    %211 = arith.subf %207, %210 : vector<16x32xf32>
    %c0_83 = arith.constant 0 : index
    %c0_84 = arith.constant 0 : index
    %212 = vector.load %arg3[%c0_83, %c0_84] : memref<16x32xf32, #tpu.memory_space<vmem>>, vector<16x32xf32>
    tpu.vector_store %arg3[%c0_83, %c0_84], %211 {strides = array<i32>} : memref<16x32xf32, #tpu.memory_space<vmem>>, vector<16x32xf32>,
    %213 = arith.index_cast %c5_i32 : i32 to index
    %c0_85 = arith.constant 0 : index
    %214 = vector.load %arg3[%213, %c0_85] : memref<16x32xf32, #tpu.memory_space<vmem>>, vector<1x32xf32>
    tpu.vector_store %arg3[%213, %c0_85], %193 {strides = array<i32>} : memref<16x32xf32, #tpu.memory_space<vmem>>, vector<1x32xf32>,
    %c6_i32 = arith.constant 6 : i32
    %215 = arith.index_cast %c6_i32 : i32 to index
    %c0_86 = arith.constant 0 : index
    %216 = vector.load %arg3[%215, %c0_86] : memref<16x32xf32, #tpu.memory_space<vmem>>, vector<1x32xf32>
    %217 = vector.broadcast %c6_i32 : i32 to vector<1x32xi32>
    %218 = arith.cmpi eq, %2, %217 : vector<1x32xi32>
    %cst_87 = arith.constant 0.000000e+00 : f32
    %219 = vector.broadcast %cst_87 : f32 to vector<1x32xf32>
    %220 = arith.select %218, %216, %219 : vector<1x32xi1>, vector<1x32xf32>
    %221 = vector.shape_cast %220 : vector<1x32xf32> to vector<1x1x32xf32>
    %cst_88 = arith.constant dense<0.000000e+00> : vector<1xf32>
    %222 = vector.multi_reduction <add>, %221, %cst_88 [1, 2] : vector<1x1x32xf32> to vector<1xf32>
    %223 = vector.shape_cast %222 : vector<1xf32> to vector<1x1x1xf32>
    %224 = vector.extract %223[0, 0, 0] : f32 from vector<1x1x1xf32>
    %cst_89 = arith.constant 1.000000e+00 : f32
    %225 = arith.divf %cst_89, %224 : f32
    %226 = vector.broadcast %225 : f32 to vector<1x32xf32>
    %227 = arith.mulf %216, %226 : vector<1x32xf32>
    %c0_90 = arith.constant 0 : index
    %c0_91 = arith.constant 0 : index
    %228 = vector.load %arg3[%c0_90, %c0_91] : memref<16x32xf32, #tpu.memory_space<vmem>>, vector<16x16xf32>
    %229 = vector.broadcast %c6_i32 : i32 to vector<1x16xi32>
    %230 = arith.cmpi eq, %1, %229 : vector<1x16xi32>
    %cst_92 = arith.constant 0.000000e+00 : f32
    %231 = vector.shape_cast %230 : vector<1x16xi1> to vector<1x16xi1>
    %232 = vector.broadcast %231 : vector<1x16xi1> to vector<16x16xi1>
    %233 = vector.broadcast %cst_92 : f32 to vector<16x16xf32>
    %234 = arith.select %232, %228, %233 : vector<16x16xi1>, vector<16x16xf32>
    %cst_93 = arith.constant dense<0.000000e+00> : vector<16xf32>
    %235 = vector.multi_reduction <add>, %234, %cst_93 [1] : vector<16x16xf32> to vector<16xf32>
    %236 = vector.shape_cast %235 : vector<16xf32> to vector<16x1xf32>
    %237 = vector.broadcast %c6_i32 : i32 to vector<16x1xi32>
    %238 = arith.cmpi eq, %0, %237 : vector<16x1xi32>
    %cst_94 = arith.constant 0.000000e+00 : f32
    %239 = vector.broadcast %cst_94 : f32 to vector<16x1xf32>
    %240 = arith.select %238, %239, %236 : vector<16x1xi1>, vector<16x1xf32>
    %c0_95 = arith.constant 0 : index
    %c0_96 = arith.constant 0 : index
    %241 = vector.load %arg3[%c0_95, %c0_96] : memref<16x32xf32, #tpu.memory_space<vmem>>, vector<16x32xf32>
    %242 = vector.broadcast %240 : vector<16x1xf32> to vector<16x32xf32>
    %243 = vector.broadcast %227 : vector<1x32xf32> to vector<16x32xf32>
    %244 = arith.mulf %242, %243 : vector<16x32xf32>
    %245 = arith.subf %241, %244 : vector<16x32xf32>
    %c0_97 = arith.constant 0 : index
    %c0_98 = arith.constant 0 : index
    %246 = vector.load %arg3[%c0_97, %c0_98] : memref<16x32xf32, #tpu.memory_space<vmem>>, vector<16x32xf32>
    tpu.vector_store %arg3[%c0_97, %c0_98], %245 {strides = array<i32>} : memref<16x32xf32, #tpu.memory_space<vmem>>, vector<16x32xf32>,
    %247 = arith.index_cast %c6_i32 : i32 to index
    %c0_99 = arith.constant 0 : index
    %248 = vector.load %arg3[%247, %c0_99] : memref<16x32xf32, #tpu.memory_space<vmem>>, vector<1x32xf32>
    tpu.vector_store %arg3[%247, %c0_99], %227 {strides = array<i32>} : memref<16x32xf32, #tpu.memory_space<vmem>>, vector<1x32xf32>,
    %c7_i32 = arith.constant 7 : i32
    %249 = arith.index_cast %c7_i32 : i32 to index
    %c0_100 = arith.constant 0 : index
    %250 = vector.load %arg3[%249, %c0_100] : memref<16x32xf32, #tpu.memory_space<vmem>>, vector<1x32xf32>
    %251 = vector.broadcast %c7_i32 : i32 to vector<1x32xi32>
    %252 = arith.cmpi eq, %2, %251 : vector<1x32xi32>
    %cst_101 = arith.constant 0.000000e+00 : f32
    %253 = vector.broadcast %cst_101 : f32 to vector<1x32xf32>
    %254 = arith.select %252, %250, %253 : vector<1x32xi1>, vector<1x32xf32>
    %255 = vector.shape_cast %254 : vector<1x32xf32> to vector<1x1x32xf32>
    %cst_102 = arith.constant dense<0.000000e+00> : vector<1xf32>
    %256 = vector.multi_reduction <add>, %255, %cst_102 [1, 2] : vector<1x1x32xf32> to vector<1xf32>
    %257 = vector.shape_cast %256 : vector<1xf32> to vector<1x1x1xf32>
    %258 = vector.extract %257[0, 0, 0] : f32 from vector<1x1x1xf32>
    %cst_103 = arith.constant 1.000000e+00 : f32
    %259 = arith.divf %cst_103, %258 : f32
    %260 = vector.broadcast %259 : f32 to vector<1x32xf32>
    %261 = arith.mulf %250, %260 : vector<1x32xf32>
    %c0_104 = arith.constant 0 : index
    %c0_105 = arith.constant 0 : index
    %262 = vector.load %arg3[%c0_104, %c0_105] : memref<16x32xf32, #tpu.memory_space<vmem>>, vector<16x16xf32>
    %263 = vector.broadcast %c7_i32 : i32 to vector<1x16xi32>
    %264 = arith.cmpi eq, %1, %263 : vector<1x16xi32>
    %cst_106 = arith.constant 0.000000e+00 : f32
    %265 = vector.shape_cast %264 : vector<1x16xi1> to vector<1x16xi1>
    %266 = vector.broadcast %265 : vector<1x16xi1> to vector<16x16xi1>
    %267 = vector.broadcast %cst_106 : f32 to vector<16x16xf32>
    %268 = arith.select %266, %262, %267 : vector<16x16xi1>, vector<16x16xf32>
    %cst_107 = arith.constant dense<0.000000e+00> : vector<16xf32>
    %269 = vector.multi_reduction <add>, %268, %cst_107 [1] : vector<16x16xf32> to vector<16xf32>
    %270 = vector.shape_cast %269 : vector<16xf32> to vector<16x1xf32>
    %271 = vector.broadcast %c7_i32 : i32 to vector<16x1xi32>
    %272 = arith.cmpi eq, %0, %271 : vector<16x1xi32>
    %cst_108 = arith.constant 0.000000e+00 : f32
    %273 = vector.broadcast %cst_108 : f32 to vector<16x1xf32>
    %274 = arith.select %272, %273, %270 : vector<16x1xi1>, vector<16x1xf32>
    %c0_109 = arith.constant 0 : index
    %c0_110 = arith.constant 0 : index
    %275 = vector.load %arg3[%c0_109, %c0_110] : memref<16x32xf32, #tpu.memory_space<vmem>>, vector<16x32xf32>
    %276 = vector.broadcast %274 : vector<16x1xf32> to vector<16x32xf32>
    %277 = vector.broadcast %261 : vector<1x32xf32> to vector<16x32xf32>
    %278 = arith.mulf %276, %277 : vector<16x32xf32>
    %279 = arith.subf %275, %278 : vector<16x32xf32>
    %c0_111 = arith.constant 0 : index
    %c0_112 = arith.constant 0 : index
    %280 = vector.load %arg3[%c0_111, %c0_112] : memref<16x32xf32, #tpu.memory_space<vmem>>, vector<16x32xf32>
    tpu.vector_store %arg3[%c0_111, %c0_112], %279 {strides = array<i32>} : memref<16x32xf32, #tpu.memory_space<vmem>>, vector<16x32xf32>,
    %281 = arith.index_cast %c7_i32 : i32 to index
    %c0_113 = arith.constant 0 : index
    %282 = vector.load %arg3[%281, %c0_113] : memref<16x32xf32, #tpu.memory_space<vmem>>, vector<1x32xf32>
    tpu.vector_store %arg3[%281, %c0_113], %261 {strides = array<i32>} : memref<16x32xf32, #tpu.memory_space<vmem>>, vector<1x32xf32>,
    %c8_i32 = arith.constant 8 : i32
    %283 = arith.index_cast %c8_i32 : i32 to index
    %c0_114 = arith.constant 0 : index
    %284 = vector.load %arg3[%283, %c0_114] : memref<16x32xf32, #tpu.memory_space<vmem>>, vector<1x32xf32>
    %285 = vector.broadcast %c8_i32 : i32 to vector<1x32xi32>
    %286 = arith.cmpi eq, %2, %285 : vector<1x32xi32>
    %cst_115 = arith.constant 0.000000e+00 : f32
    %287 = vector.broadcast %cst_115 : f32 to vector<1x32xf32>
    %288 = arith.select %286, %284, %287 : vector<1x32xi1>, vector<1x32xf32>
    %289 = vector.shape_cast %288 : vector<1x32xf32> to vector<1x1x32xf32>
    %cst_116 = arith.constant dense<0.000000e+00> : vector<1xf32>
    %290 = vector.multi_reduction <add>, %289, %cst_116 [1, 2] : vector<1x1x32xf32> to vector<1xf32>
    %291 = vector.shape_cast %290 : vector<1xf32> to vector<1x1x1xf32>
    %292 = vector.extract %291[0, 0, 0] : f32 from vector<1x1x1xf32>
    %cst_117 = arith.constant 1.000000e+00 : f32
    %293 = arith.divf %cst_117, %292 : f32
    %294 = vector.broadcast %293 : f32 to vector<1x32xf32>
    %295 = arith.mulf %284, %294 : vector<1x32xf32>
    %c0_118 = arith.constant 0 : index
    %c0_119 = arith.constant 0 : index
    %296 = vector.load %arg3[%c0_118, %c0_119] : memref<16x32xf32, #tpu.memory_space<vmem>>, vector<16x16xf32>
    %297 = vector.broadcast %c8_i32 : i32 to vector<1x16xi32>
    %298 = arith.cmpi eq, %1, %297 : vector<1x16xi32>
    %cst_120 = arith.constant 0.000000e+00 : f32
    %299 = vector.shape_cast %298 : vector<1x16xi1> to vector<1x16xi1>
    %300 = vector.broadcast %299 : vector<1x16xi1> to vector<16x16xi1>
    %301 = vector.broadcast %cst_120 : f32 to vector<16x16xf32>
    %302 = arith.select %300, %296, %301 : vector<16x16xi1>, vector<16x16xf32>
    %cst_121 = arith.constant dense<0.000000e+00> : vector<16xf32>
    %303 = vector.multi_reduction <add>, %302, %cst_121 [1] : vector<16x16xf32> to vector<16xf32>
    %304 = vector.shape_cast %303 : vector<16xf32> to vector<16x1xf32>
    %305 = vector.broadcast %c8_i32 : i32 to vector<16x1xi32>
    %306 = arith.cmpi eq, %0, %305 : vector<16x1xi32>
    %cst_122 = arith.constant 0.000000e+00 : f32
    %307 = vector.broadcast %cst_122 : f32 to vector<16x1xf32>
    %308 = arith.select %306, %307, %304 : vector<16x1xi1>, vector<16x1xf32>
    %c0_123 = arith.constant 0 : index
    %c0_124 = arith.constant 0 : index
    %309 = vector.load %arg3[%c0_123, %c0_124] : memref<16x32xf32, #tpu.memory_space<vmem>>, vector<16x32xf32>
    %310 = vector.broadcast %308 : vector<16x1xf32> to vector<16x32xf32>
    %311 = vector.broadcast %295 : vector<1x32xf32> to vector<16x32xf32>
    %312 = arith.mulf %310, %311 : vector<16x32xf32>
    %313 = arith.subf %309, %312 : vector<16x32xf32>
    %c0_125 = arith.constant 0 : index
    %c0_126 = arith.constant 0 : index
    %314 = vector.load %arg3[%c0_125, %c0_126] : memref<16x32xf32, #tpu.memory_space<vmem>>, vector<16x32xf32>
    tpu.vector_store %arg3[%c0_125, %c0_126], %313 {strides = array<i32>} : memref<16x32xf32, #tpu.memory_space<vmem>>, vector<16x32xf32>,
    %315 = arith.index_cast %c8_i32 : i32 to index
    %c0_127 = arith.constant 0 : index
    %316 = vector.load %arg3[%315, %c0_127] : memref<16x32xf32, #tpu.memory_space<vmem>>, vector<1x32xf32>
    tpu.vector_store %arg3[%315, %c0_127], %295 {strides = array<i32>} : memref<16x32xf32, #tpu.memory_space<vmem>>, vector<1x32xf32>,
    %c9_i32 = arith.constant 9 : i32
    %317 = arith.index_cast %c9_i32 : i32 to index
    %c0_128 = arith.constant 0 : index
    %318 = vector.load %arg3[%317, %c0_128] : memref<16x32xf32, #tpu.memory_space<vmem>>, vector<1x32xf32>
    %319 = vector.broadcast %c9_i32 : i32 to vector<1x32xi32>
    %320 = arith.cmpi eq, %2, %319 : vector<1x32xi32>
    %cst_129 = arith.constant 0.000000e+00 : f32
    %321 = vector.broadcast %cst_129 : f32 to vector<1x32xf32>
    %322 = arith.select %320, %318, %321 : vector<1x32xi1>, vector<1x32xf32>
    %323 = vector.shape_cast %322 : vector<1x32xf32> to vector<1x1x32xf32>
    %cst_130 = arith.constant dense<0.000000e+00> : vector<1xf32>
    %324 = vector.multi_reduction <add>, %323, %cst_130 [1, 2] : vector<1x1x32xf32> to vector<1xf32>
    %325 = vector.shape_cast %324 : vector<1xf32> to vector<1x1x1xf32>
    %326 = vector.extract %325[0, 0, 0] : f32 from vector<1x1x1xf32>
    %cst_131 = arith.constant 1.000000e+00 : f32
    %327 = arith.divf %cst_131, %326 : f32
    %328 = vector.broadcast %327 : f32 to vector<1x32xf32>
    %329 = arith.mulf %318, %328 : vector<1x32xf32>
    %c0_132 = arith.constant 0 : index
    %c0_133 = arith.constant 0 : index
    %330 = vector.load %arg3[%c0_132, %c0_133] : memref<16x32xf32, #tpu.memory_space<vmem>>, vector<16x16xf32>
    %331 = vector.broadcast %c9_i32 : i32 to vector<1x16xi32>
    %332 = arith.cmpi eq, %1, %331 : vector<1x16xi32>
    %cst_134 = arith.constant 0.000000e+00 : f32
    %333 = vector.shape_cast %332 : vector<1x16xi1> to vector<1x16xi1>
    %334 = vector.broadcast %333 : vector<1x16xi1> to vector<16x16xi1>
    %335 = vector.broadcast %cst_134 : f32 to vector<16x16xf32>
    %336 = arith.select %334, %330, %335 : vector<16x16xi1>, vector<16x16xf32>
    %cst_135 = arith.constant dense<0.000000e+00> : vector<16xf32>
    %337 = vector.multi_reduction <add>, %336, %cst_135 [1] : vector<16x16xf32> to vector<16xf32>
    %338 = vector.shape_cast %337 : vector<16xf32> to vector<16x1xf32>
    %339 = vector.broadcast %c9_i32 : i32 to vector<16x1xi32>
    %340 = arith.cmpi eq, %0, %339 : vector<16x1xi32>
    %cst_136 = arith.constant 0.000000e+00 : f32
    %341 = vector.broadcast %cst_136 : f32 to vector<16x1xf32>
    %342 = arith.select %340, %341, %338 : vector<16x1xi1>, vector<16x1xf32>
    %c0_137 = arith.constant 0 : index
    %c0_138 = arith.constant 0 : index
    %343 = vector.load %arg3[%c0_137, %c0_138] : memref<16x32xf32, #tpu.memory_space<vmem>>, vector<16x32xf32>
    %344 = vector.broadcast %342 : vector<16x1xf32> to vector<16x32xf32>
    %345 = vector.broadcast %329 : vector<1x32xf32> to vector<16x32xf32>
    %346 = arith.mulf %344, %345 : vector<16x32xf32>
    %347 = arith.subf %343, %346 : vector<16x32xf32>
    %c0_139 = arith.constant 0 : index
    %c0_140 = arith.constant 0 : index
    %348 = vector.load %arg3[%c0_139, %c0_140] : memref<16x32xf32, #tpu.memory_space<vmem>>, vector<16x32xf32>
    tpu.vector_store %arg3[%c0_139, %c0_140], %347 {strides = array<i32>} : memref<16x32xf32, #tpu.memory_space<vmem>>, vector<16x32xf32>,
    %349 = arith.index_cast %c9_i32 : i32 to index
    %c0_141 = arith.constant 0 : index
    %350 = vector.load %arg3[%349, %c0_141] : memref<16x32xf32, #tpu.memory_space<vmem>>, vector<1x32xf32>
    tpu.vector_store %arg3[%349, %c0_141], %329 {strides = array<i32>} : memref<16x32xf32, #tpu.memory_space<vmem>>, vector<1x32xf32>,
    %c10_i32 = arith.constant 10 : i32
    %351 = arith.index_cast %c10_i32 : i32 to index
    %c0_142 = arith.constant 0 : index
    %352 = vector.load %arg3[%351, %c0_142] : memref<16x32xf32, #tpu.memory_space<vmem>>, vector<1x32xf32>
    %353 = vector.broadcast %c10_i32 : i32 to vector<1x32xi32>
    %354 = arith.cmpi eq, %2, %353 : vector<1x32xi32>
    %cst_143 = arith.constant 0.000000e+00 : f32
    %355 = vector.broadcast %cst_143 : f32 to vector<1x32xf32>
    %356 = arith.select %354, %352, %355 : vector<1x32xi1>, vector<1x32xf32>
    %357 = vector.shape_cast %356 : vector<1x32xf32> to vector<1x1x32xf32>
    %cst_144 = arith.constant dense<0.000000e+00> : vector<1xf32>
    %358 = vector.multi_reduction <add>, %357, %cst_144 [1, 2] : vector<1x1x32xf32> to vector<1xf32>
    %359 = vector.shape_cast %358 : vector<1xf32> to vector<1x1x1xf32>
    %360 = vector.extract %359[0, 0, 0] : f32 from vector<1x1x1xf32>
    %cst_145 = arith.constant 1.000000e+00 : f32
    %361 = arith.divf %cst_145, %360 : f32
    %362 = vector.broadcast %361 : f32 to vector<1x32xf32>
    %363 = arith.mulf %352, %362 : vector<1x32xf32>
    %c0_146 = arith.constant 0 : index
    %c0_147 = arith.constant 0 : index
    %364 = vector.load %arg3[%c0_146, %c0_147] : memref<16x32xf32, #tpu.memory_space<vmem>>, vector<16x16xf32>
    %365 = vector.broadcast %c10_i32 : i32 to vector<1x16xi32>
    %366 = arith.cmpi eq, %1, %365 : vector<1x16xi32>
    %cst_148 = arith.constant 0.000000e+00 : f32
    %367 = vector.shape_cast %366 : vector<1x16xi1> to vector<1x16xi1>
    %368 = vector.broadcast %367 : vector<1x16xi1> to vector<16x16xi1>
    %369 = vector.broadcast %cst_148 : f32 to vector<16x16xf32>
    %370 = arith.select %368, %364, %369 : vector<16x16xi1>, vector<16x16xf32>
    %cst_149 = arith.constant dense<0.000000e+00> : vector<16xf32>
    %371 = vector.multi_reduction <add>, %370, %cst_149 [1] : vector<16x16xf32> to vector<16xf32>
    %372 = vector.shape_cast %371 : vector<16xf32> to vector<16x1xf32>
    %373 = vector.broadcast %c10_i32 : i32 to vector<16x1xi32>
    %374 = arith.cmpi eq, %0, %373 : vector<16x1xi32>
    %cst_150 = arith.constant 0.000000e+00 : f32
    %375 = vector.broadcast %cst_150 : f32 to vector<16x1xf32>
    %376 = arith.select %374, %375, %372 : vector<16x1xi1>, vector<16x1xf32>
    %c0_151 = arith.constant 0 : index
    %c0_152 = arith.constant 0 : index
    %377 = vector.load %arg3[%c0_151, %c0_152] : memref<16x32xf32, #tpu.memory_space<vmem>>, vector<16x32xf32>
    %378 = vector.broadcast %376 : vector<16x1xf32> to vector<16x32xf32>
    %379 = vector.broadcast %363 : vector<1x32xf32> to vector<16x32xf32>
    %380 = arith.mulf %378, %379 : vector<16x32xf32>
    %381 = arith.subf %377, %380 : vector<16x32xf32>
    %c0_153 = arith.constant 0 : index
    %c0_154 = arith.constant 0 : index
    %382 = vector.load %arg3[%c0_153, %c0_154] : memref<16x32xf32, #tpu.memory_space<vmem>>, vector<16x32xf32>
    tpu.vector_store %arg3[%c0_153, %c0_154], %381 {strides = array<i32>} : memref<16x32xf32, #tpu.memory_space<vmem>>, vector<16x32xf32>,
    %383 = arith.index_cast %c10_i32 : i32 to index
    %c0_155 = arith.constant 0 : index
    %384 = vector.load %arg3[%383, %c0_155] : memref<16x32xf32, #tpu.memory_space<vmem>>, vector<1x32xf32>
    tpu.vector_store %arg3[%383, %c0_155], %363 {strides = array<i32>} : memref<16x32xf32, #tpu.memory_space<vmem>>, vector<1x32xf32>,
    %c11_i32 = arith.constant 11 : i32
    %385 = arith.index_cast %c11_i32 : i32 to index
    %c0_156 = arith.constant 0 : index
    %386 = vector.load %arg3[%385, %c0_156] : memref<16x32xf32, #tpu.memory_space<vmem>>, vector<1x32xf32>
    %387 = vector.broadcast %c11_i32 : i32 to vector<1x32xi32>
    %388 = arith.cmpi eq, %2, %387 : vector<1x32xi32>
    %cst_157 = arith.constant 0.000000e+00 : f32
    %389 = vector.broadcast %cst_157 : f32 to vector<1x32xf32>
    %390 = arith.select %388, %386, %389 : vector<1x32xi1>, vector<1x32xf32>
    %391 = vector.shape_cast %390 : vector<1x32xf32> to vector<1x1x32xf32>
    %cst_158 = arith.constant dense<0.000000e+00> : vector<1xf32>
    %392 = vector.multi_reduction <add>, %391, %cst_158 [1, 2] : vector<1x1x32xf32> to vector<1xf32>
    %393 = vector.shape_cast %392 : vector<1xf32> to vector<1x1x1xf32>
    %394 = vector.extract %393[0, 0, 0] : f32 from vector<1x1x1xf32>
    %cst_159 = arith.constant 1.000000e+00 : f32
    %395 = arith.divf %cst_159, %394 : f32
    %396 = vector.broadcast %395 : f32 to vector<1x32xf32>
    %397 = arith.mulf %386, %396 : vector<1x32xf32>
    %c0_160 = arith.constant 0 : index
    %c0_161 = arith.constant 0 : index
    %398 = vector.load %arg3[%c0_160, %c0_161] : memref<16x32xf32, #tpu.memory_space<vmem>>, vector<16x16xf32>
    %399 = vector.broadcast %c11_i32 : i32 to vector<1x16xi32>
    %400 = arith.cmpi eq, %1, %399 : vector<1x16xi32>
    %cst_162 = arith.constant 0.000000e+00 : f32
    %401 = vector.shape_cast %400 : vector<1x16xi1> to vector<1x16xi1>
    %402 = vector.broadcast %401 : vector<1x16xi1> to vector<16x16xi1>
    %403 = vector.broadcast %cst_162 : f32 to vector<16x16xf32>
    %404 = arith.select %402, %398, %403 : vector<16x16xi1>, vector<16x16xf32>
    %cst_163 = arith.constant dense<0.000000e+00> : vector<16xf32>
    %405 = vector.multi_reduction <add>, %404, %cst_163 [1] : vector<16x16xf32> to vector<16xf32>
    %406 = vector.shape_cast %405 : vector<16xf32> to vector<16x1xf32>
    %407 = vector.broadcast %c11_i32 : i32 to vector<16x1xi32>
    %408 = arith.cmpi eq, %0, %407 : vector<16x1xi32>
    %cst_164 = arith.constant 0.000000e+00 : f32
    %409 = vector.broadcast %cst_164 : f32 to vector<16x1xf32>
    %410 = arith.select %408, %409, %406 : vector<16x1xi1>, vector<16x1xf32>
    %c0_165 = arith.constant 0 : index
    %c0_166 = arith.constant 0 : index
    %411 = vector.load %arg3[%c0_165, %c0_166] : memref<16x32xf32, #tpu.memory_space<vmem>>, vector<16x32xf32>
    %412 = vector.broadcast %410 : vector<16x1xf32> to vector<16x32xf32>
    %413 = vector.broadcast %397 : vector<1x32xf32> to vector<16x32xf32>
    %414 = arith.mulf %412, %413 : vector<16x32xf32>
    %415 = arith.subf %411, %414 : vector<16x32xf32>
    %c0_167 = arith.constant 0 : index
    %c0_168 = arith.constant 0 : index
    %416 = vector.load %arg3[%c0_167, %c0_168] : memref<16x32xf32, #tpu.memory_space<vmem>>, vector<16x32xf32>
    tpu.vector_store %arg3[%c0_167, %c0_168], %415 {strides = array<i32>} : memref<16x32xf32, #tpu.memory_space<vmem>>, vector<16x32xf32>,
    %417 = arith.index_cast %c11_i32 : i32 to index
    %c0_169 = arith.constant 0 : index
    %418 = vector.load %arg3[%417, %c0_169] : memref<16x32xf32, #tpu.memory_space<vmem>>, vector<1x32xf32>
    tpu.vector_store %arg3[%417, %c0_169], %397 {strides = array<i32>} : memref<16x32xf32, #tpu.memory_space<vmem>>, vector<1x32xf32>,
    %c12_i32 = arith.constant 12 : i32
    %419 = arith.index_cast %c12_i32 : i32 to index
    %c0_170 = arith.constant 0 : index
    %420 = vector.load %arg3[%419, %c0_170] : memref<16x32xf32, #tpu.memory_space<vmem>>, vector<1x32xf32>
    %421 = vector.broadcast %c12_i32 : i32 to vector<1x32xi32>
    %422 = arith.cmpi eq, %2, %421 : vector<1x32xi32>
    %cst_171 = arith.constant 0.000000e+00 : f32
    %423 = vector.broadcast %cst_171 : f32 to vector<1x32xf32>
    %424 = arith.select %422, %420, %423 : vector<1x32xi1>, vector<1x32xf32>
    %425 = vector.shape_cast %424 : vector<1x32xf32> to vector<1x1x32xf32>
    %cst_172 = arith.constant dense<0.000000e+00> : vector<1xf32>
    %426 = vector.multi_reduction <add>, %425, %cst_172 [1, 2] : vector<1x1x32xf32> to vector<1xf32>
    %427 = vector.shape_cast %426 : vector<1xf32> to vector<1x1x1xf32>
    %428 = vector.extract %427[0, 0, 0] : f32 from vector<1x1x1xf32>
    %cst_173 = arith.constant 1.000000e+00 : f32
    %429 = arith.divf %cst_173, %428 : f32
    %430 = vector.broadcast %429 : f32 to vector<1x32xf32>
    %431 = arith.mulf %420, %430 : vector<1x32xf32>
    %c0_174 = arith.constant 0 : index
    %c0_175 = arith.constant 0 : index
    %432 = vector.load %arg3[%c0_174, %c0_175] : memref<16x32xf32, #tpu.memory_space<vmem>>, vector<16x16xf32>
    %433 = vector.broadcast %c12_i32 : i32 to vector<1x16xi32>
    %434 = arith.cmpi eq, %1, %433 : vector<1x16xi32>
    %cst_176 = arith.constant 0.000000e+00 : f32
    %435 = vector.shape_cast %434 : vector<1x16xi1> to vector<1x16xi1>
    %436 = vector.broadcast %435 : vector<1x16xi1> to vector<16x16xi1>
    %437 = vector.broadcast %cst_176 : f32 to vector<16x16xf32>
    %438 = arith.select %436, %432, %437 : vector<16x16xi1>, vector<16x16xf32>
    %cst_177 = arith.constant dense<0.000000e+00> : vector<16xf32>
    %439 = vector.multi_reduction <add>, %438, %cst_177 [1] : vector<16x16xf32> to vector<16xf32>
    %440 = vector.shape_cast %439 : vector<16xf32> to vector<16x1xf32>
    %441 = vector.broadcast %c12_i32 : i32 to vector<16x1xi32>
    %442 = arith.cmpi eq, %0, %441 : vector<16x1xi32>
    %cst_178 = arith.constant 0.000000e+00 : f32
    %443 = vector.broadcast %cst_178 : f32 to vector<16x1xf32>
    %444 = arith.select %442, %443, %440 : vector<16x1xi1>, vector<16x1xf32>
    %c0_179 = arith.constant 0 : index
    %c0_180 = arith.constant 0 : index
    %445 = vector.load %arg3[%c0_179, %c0_180] : memref<16x32xf32, #tpu.memory_space<vmem>>, vector<16x32xf32>
    %446 = vector.broadcast %444 : vector<16x1xf32> to vector<16x32xf32>
    %447 = vector.broadcast %431 : vector<1x32xf32> to vector<16x32xf32>
    %448 = arith.mulf %446, %447 : vector<16x32xf32>
    %449 = arith.subf %445, %448 : vector<16x32xf32>
    %c0_181 = arith.constant 0 : index
    %c0_182 = arith.constant 0 : index
    %450 = vector.load %arg3[%c0_181, %c0_182] : memref<16x32xf32, #tpu.memory_space<vmem>>, vector<16x32xf32>
    tpu.vector_store %arg3[%c0_181, %c0_182], %449 {strides = array<i32>} : memref<16x32xf32, #tpu.memory_space<vmem>>, vector<16x32xf32>,
    %451 = arith.index_cast %c12_i32 : i32 to index
    %c0_183 = arith.constant 0 : index
    %452 = vector.load %arg3[%451, %c0_183] : memref<16x32xf32, #tpu.memory_space<vmem>>, vector<1x32xf32>
    tpu.vector_store %arg3[%451, %c0_183], %431 {strides = array<i32>} : memref<16x32xf32, #tpu.memory_space<vmem>>, vector<1x32xf32>,
    %c13_i32 = arith.constant 13 : i32
    %453 = arith.index_cast %c13_i32 : i32 to index
    %c0_184 = arith.constant 0 : index
    %454 = vector.load %arg3[%453, %c0_184] : memref<16x32xf32, #tpu.memory_space<vmem>>, vector<1x32xf32>
    %455 = vector.broadcast %c13_i32 : i32 to vector<1x32xi32>
    %456 = arith.cmpi eq, %2, %455 : vector<1x32xi32>
    %cst_185 = arith.constant 0.000000e+00 : f32
    %457 = vector.broadcast %cst_185 : f32 to vector<1x32xf32>
    %458 = arith.select %456, %454, %457 : vector<1x32xi1>, vector<1x32xf32>
    %459 = vector.shape_cast %458 : vector<1x32xf32> to vector<1x1x32xf32>
    %cst_186 = arith.constant dense<0.000000e+00> : vector<1xf32>
    %460 = vector.multi_reduction <add>, %459, %cst_186 [1, 2] : vector<1x1x32xf32> to vector<1xf32>
    %461 = vector.shape_cast %460 : vector<1xf32> to vector<1x1x1xf32>
    %462 = vector.extract %461[0, 0, 0] : f32 from vector<1x1x1xf32>
    %cst_187 = arith.constant 1.000000e+00 : f32
    %463 = arith.divf %cst_187, %462 : f32
    %464 = vector.broadcast %463 : f32 to vector<1x32xf32>
    %465 = arith.mulf %454, %464 : vector<1x32xf32>
    %c0_188 = arith.constant 0 : index
    %c0_189 = arith.constant 0 : index
    %466 = vector.load %arg3[%c0_188, %c0_189] : memref<16x32xf32, #tpu.memory_space<vmem>>, vector<16x16xf32>
    %467 = vector.broadcast %c13_i32 : i32 to vector<1x16xi32>
    %468 = arith.cmpi eq, %1, %467 : vector<1x16xi32>
    %cst_190 = arith.constant 0.000000e+00 : f32
    %469 = vector.shape_cast %468 : vector<1x16xi1> to vector<1x16xi1>
    %470 = vector.broadcast %469 : vector<1x16xi1> to vector<16x16xi1>
    %471 = vector.broadcast %cst_190 : f32 to vector<16x16xf32>
    %472 = arith.select %470, %466, %471 : vector<16x16xi1>, vector<16x16xf32>
    %cst_191 = arith.constant dense<0.000000e+00> : vector<16xf32>
    %473 = vector.multi_reduction <add>, %472, %cst_191 [1] : vector<16x16xf32> to vector<16xf32>
    %474 = vector.shape_cast %473 : vector<16xf32> to vector<16x1xf32>
    %475 = vector.broadcast %c13_i32 : i32 to vector<16x1xi32>
    %476 = arith.cmpi eq, %0, %475 : vector<16x1xi32>
    %cst_192 = arith.constant 0.000000e+00 : f32
    %477 = vector.broadcast %cst_192 : f32 to vector<16x1xf32>
    %478 = arith.select %476, %477, %474 : vector<16x1xi1>, vector<16x1xf32>
    %c0_193 = arith.constant 0 : index
    %c0_194 = arith.constant 0 : index
    %479 = vector.load %arg3[%c0_193, %c0_194] : memref<16x32xf32, #tpu.memory_space<vmem>>, vector<16x32xf32>
    %480 = vector.broadcast %478 : vector<16x1xf32> to vector<16x32xf32>
    %481 = vector.broadcast %465 : vector<1x32xf32> to vector<16x32xf32>
    %482 = arith.mulf %480, %481 : vector<16x32xf32>
    %483 = arith.subf %479, %482 : vector<16x32xf32>
    %c0_195 = arith.constant 0 : index
    %c0_196 = arith.constant 0 : index
    %484 = vector.load %arg3[%c0_195, %c0_196] : memref<16x32xf32, #tpu.memory_space<vmem>>, vector<16x32xf32>
    tpu.vector_store %arg3[%c0_195, %c0_196], %483 {strides = array<i32>} : memref<16x32xf32, #tpu.memory_space<vmem>>, vector<16x32xf32>,
    %485 = arith.index_cast %c13_i32 : i32 to index
    %c0_197 = arith.constant 0 : index
    %486 = vector.load %arg3[%485, %c0_197] : memref<16x32xf32, #tpu.memory_space<vmem>>, vector<1x32xf32>
    tpu.vector_store %arg3[%485, %c0_197], %465 {strides = array<i32>} : memref<16x32xf32, #tpu.memory_space<vmem>>, vector<1x32xf32>,
    %c14_i32 = arith.constant 14 : i32
    %487 = arith.index_cast %c14_i32 : i32 to index
    %c0_198 = arith.constant 0 : index
    %488 = vector.load %arg3[%487, %c0_198] : memref<16x32xf32, #tpu.memory_space<vmem>>, vector<1x32xf32>
    %489 = vector.broadcast %c14_i32 : i32 to vector<1x32xi32>
    %490 = arith.cmpi eq, %2, %489 : vector<1x32xi32>
    %cst_199 = arith.constant 0.000000e+00 : f32
    %491 = vector.broadcast %cst_199 : f32 to vector<1x32xf32>
    %492 = arith.select %490, %488, %491 : vector<1x32xi1>, vector<1x32xf32>
    %493 = vector.shape_cast %492 : vector<1x32xf32> to vector<1x1x32xf32>
    %cst_200 = arith.constant dense<0.000000e+00> : vector<1xf32>
    %494 = vector.multi_reduction <add>, %493, %cst_200 [1, 2] : vector<1x1x32xf32> to vector<1xf32>
    %495 = vector.shape_cast %494 : vector<1xf32> to vector<1x1x1xf32>
    %496 = vector.extract %495[0, 0, 0] : f32 from vector<1x1x1xf32>
    %cst_201 = arith.constant 1.000000e+00 : f32
    %497 = arith.divf %cst_201, %496 : f32
    %498 = vector.broadcast %497 : f32 to vector<1x32xf32>
    %499 = arith.mulf %488, %498 : vector<1x32xf32>
    %c0_202 = arith.constant 0 : index
    %c0_203 = arith.constant 0 : index
    %500 = vector.load %arg3[%c0_202, %c0_203] : memref<16x32xf32, #tpu.memory_space<vmem>>, vector<16x16xf32>
    %501 = vector.broadcast %c14_i32 : i32 to vector<1x16xi32>
    %502 = arith.cmpi eq, %1, %501 : vector<1x16xi32>
    %cst_204 = arith.constant 0.000000e+00 : f32
    %503 = vector.shape_cast %502 : vector<1x16xi1> to vector<1x16xi1>
    %504 = vector.broadcast %503 : vector<1x16xi1> to vector<16x16xi1>
    %505 = vector.broadcast %cst_204 : f32 to vector<16x16xf32>
    %506 = arith.select %504, %500, %505 : vector<16x16xi1>, vector<16x16xf32>
    %cst_205 = arith.constant dense<0.000000e+00> : vector<16xf32>
    %507 = vector.multi_reduction <add>, %506, %cst_205 [1] : vector<16x16xf32> to vector<16xf32>
    %508 = vector.shape_cast %507 : vector<16xf32> to vector<16x1xf32>
    %509 = vector.broadcast %c14_i32 : i32 to vector<16x1xi32>
    %510 = arith.cmpi eq, %0, %509 : vector<16x1xi32>
    %cst_206 = arith.constant 0.000000e+00 : f32
    %511 = vector.broadcast %cst_206 : f32 to vector<16x1xf32>
    %512 = arith.select %510, %511, %508 : vector<16x1xi1>, vector<16x1xf32>
    %c0_207 = arith.constant 0 : index
    %c0_208 = arith.constant 0 : index
    %513 = vector.load %arg3[%c0_207, %c0_208] : memref<16x32xf32, #tpu.memory_space<vmem>>, vector<16x32xf32>
    %514 = vector.broadcast %512 : vector<16x1xf32> to vector<16x32xf32>
    %515 = vector.broadcast %499 : vector<1x32xf32> to vector<16x32xf32>
    %516 = arith.mulf %514, %515 : vector<16x32xf32>
    %517 = arith.subf %513, %516 : vector<16x32xf32>
    %c0_209 = arith.constant 0 : index
    %c0_210 = arith.constant 0 : index
    %518 = vector.load %arg3[%c0_209, %c0_210] : memref<16x32xf32, #tpu.memory_space<vmem>>, vector<16x32xf32>
    tpu.vector_store %arg3[%c0_209, %c0_210], %517 {strides = array<i32>} : memref<16x32xf32, #tpu.memory_space<vmem>>, vector<16x32xf32>,
    %519 = arith.index_cast %c14_i32 : i32 to index
    %c0_211 = arith.constant 0 : index
    %520 = vector.load %arg3[%519, %c0_211] : memref<16x32xf32, #tpu.memory_space<vmem>>, vector<1x32xf32>
    tpu.vector_store %arg3[%519, %c0_211], %499 {strides = array<i32>} : memref<16x32xf32, #tpu.memory_space<vmem>>, vector<1x32xf32>,
    %c15_i32 = arith.constant 15 : i32
    %521 = arith.index_cast %c15_i32 : i32 to index
    %c0_212 = arith.constant 0 : index
    %522 = vector.load %arg3[%521, %c0_212] : memref<16x32xf32, #tpu.memory_space<vmem>>, vector<1x32xf32>
    %523 = vector.broadcast %c15_i32 : i32 to vector<1x32xi32>
    %524 = arith.cmpi eq, %2, %523 : vector<1x32xi32>
    %cst_213 = arith.constant 0.000000e+00 : f32
    %525 = vector.broadcast %cst_213 : f32 to vector<1x32xf32>
    %526 = arith.select %524, %522, %525 : vector<1x32xi1>, vector<1x32xf32>
    %527 = vector.shape_cast %526 : vector<1x32xf32> to vector<1x1x32xf32>
    %cst_214 = arith.constant dense<0.000000e+00> : vector<1xf32>
    %528 = vector.multi_reduction <add>, %527, %cst_214 [1, 2] : vector<1x1x32xf32> to vector<1xf32>
    %529 = vector.shape_cast %528 : vector<1xf32> to vector<1x1x1xf32>
    %530 = vector.extract %529[0, 0, 0] : f32 from vector<1x1x1xf32>
    %cst_215 = arith.constant 1.000000e+00 : f32
    %531 = arith.divf %cst_215, %530 : f32
    %532 = vector.broadcast %531 : f32 to vector<1x32xf32>
    %533 = arith.mulf %522, %532 : vector<1x32xf32>
    %c0_216 = arith.constant 0 : index
    %c0_217 = arith.constant 0 : index
    %534 = vector.load %arg3[%c0_216, %c0_217] : memref<16x32xf32, #tpu.memory_space<vmem>>, vector<16x16xf32>
    %535 = vector.broadcast %c15_i32 : i32 to vector<1x16xi32>
    %536 = arith.cmpi eq, %1, %535 : vector<1x16xi32>
    %cst_218 = arith.constant 0.000000e+00 : f32
    %537 = vector.shape_cast %536 : vector<1x16xi1> to vector<1x16xi1>
    %538 = vector.broadcast %537 : vector<1x16xi1> to vector<16x16xi1>
    %539 = vector.broadcast %cst_218 : f32 to vector<16x16xf32>
    %540 = arith.select %538, %534, %539 : vector<16x16xi1>, vector<16x16xf32>
    %cst_219 = arith.constant dense<0.000000e+00> : vector<16xf32>
    %541 = vector.multi_reduction <add>, %540, %cst_219 [1] : vector<16x16xf32> to vector<16xf32>
    %542 = vector.shape_cast %541 : vector<16xf32> to vector<16x1xf32>
    %543 = vector.broadcast %c15_i32 : i32 to vector<16x1xi32>
    %544 = arith.cmpi eq, %0, %543 : vector<16x1xi32>
    %cst_220 = arith.constant 0.000000e+00 : f32
    %545 = vector.broadcast %cst_220 : f32 to vector<16x1xf32>
    %546 = arith.select %544, %545, %542 : vector<16x1xi1>, vector<16x1xf32>
    %c0_221 = arith.constant 0 : index
    %c0_222 = arith.constant 0 : index
    %547 = vector.load %arg3[%c0_221, %c0_222] : memref<16x32xf32, #tpu.memory_space<vmem>>, vector<16x32xf32>
    %548 = vector.broadcast %546 : vector<16x1xf32> to vector<16x32xf32>
    %549 = vector.broadcast %533 : vector<1x32xf32> to vector<16x32xf32>
    %550 = arith.mulf %548, %549 : vector<16x32xf32>
    %551 = arith.subf %547, %550 : vector<16x32xf32>
    %c0_223 = arith.constant 0 : index
    %c0_224 = arith.constant 0 : index
    %552 = vector.load %arg3[%c0_223, %c0_224] : memref<16x32xf32, #tpu.memory_space<vmem>>, vector<16x32xf32>
    tpu.vector_store %arg3[%c0_223, %c0_224], %551 {strides = array<i32>} : memref<16x32xf32, #tpu.memory_space<vmem>>, vector<16x32xf32>,
    %553 = arith.index_cast %c15_i32 : i32 to index
    %c0_225 = arith.constant 0 : index
    %554 = vector.load %arg3[%553, %c0_225] : memref<16x32xf32, #tpu.memory_space<vmem>>, vector<1x32xf32>
    tpu.vector_store %arg3[%553, %c0_225], %533 {strides = array<i32>} : memref<16x32xf32, #tpu.memory_space<vmem>>, vector<1x32xf32>,
    %c16_i32 = arith.constant 16 : i32
    %c0_226 = arith.constant 0 : index
    %c16 = arith.constant 16 : index
    %555 = vector.load %arg3[%c0_226, %c16] : memref<16x32xf32, #tpu.memory_space<vmem>>, vector<16x16xf32>
    %c0_227 = arith.constant 0 : index
    %c0_228 = arith.constant 0 : index
    %556 = vector.load %arg2[%c0_227, %c0_228] : memref<16x16xf32, #tpu.memory_space<vmem>>, vector<16x16xf32>
    tpu.vector_store %arg2[%c0_227, %c0_228], %555 {strides = array<i32>} : memref<16x16xf32, #tpu.memory_space<vmem>>, vector<16x16xf32>,
    return
  }
  func.func @transform_0(%arg0: i32) -> (i32, i32) {
    %c0_i32 = arith.constant 0 : i32
    %c0_i32_0 = arith.constant 0 : i32
    %c0_i32_1 = arith.constant 0 : i32
    return %c0_i32, %c0_i32_0 : i32, i32
  }
  func.func @transform_1(%arg0: i32) -> (i32, i32) {
    %c0_i32 = arith.constant 0 : i32
    %c0_i32_0 = arith.constant 0 : i32
    %c0_i32_1 = arith.constant 0 : i32
    return %c0_i32, %c0_i32_0 : i32, i32
  }
}

</mosaic_0001>

<llo_original>
// kernel: tpu_custom_call.1
$region0: #{tpu_custom_call.1}
  #allocation0 [shape = 'u32[]', space=smem, size = 0x4, offset = 0x4, fixed_abs, tag = 'smem constant byte address 0x4 - core index']
  #allocation1 [shape = 'u32[144,128]{1,0:T(1,128)}', space=vmem, size = 0x12000, scoped, tag = 'internal scratch']
  #allocation2 [shape = 'f32[16,32]{1,0:T(8,128)}', space=vmem, size = 0x2000, scoped, tag = 'scratch operand']
  %s0 = inlined_call_operand.hbm [shape: f32[16,16], index: 0, kind: input, shape index: {}]
  %s1 = inlined_call_operand.hbm [shape: f32[16,16], index: 1, kind: output, shape index: {}]
  %s2 = sld [smem:[#allocation0]]
  $region18: #{tpu_custom_call.1} parent=0
    _
  %s4 = ssub.s32 1, %s2
  %s5 = scalar_select 0, %s4, %s2
  $region1: #{tpu_custom_call.1} parent=0
    #allocation3 [shape = 'u8[8192]{0}', space=vmem, size = 0x2000, scoped, tag = 'input window, operand 0, single buffered']
    #allocation4 [shape = 's32[1]{0}', space=sflag, size = 0x4, scoped, tag = 'scoped memory for tpu_custom_call.1']
    #allocation5 [shape = 's32[1]{0}', space=sflag, size = 0x4, scoped, tag = 'scoped memory for tpu_custom_call.1']
    #allocation6 [shape = 'u8[8192]{0}', space=vmem, size = 0x2000, scoped, tag = 'output window, operand 0, single buffered']
    %6 = vsyncpa [#allocation4], 0
    %7 = vsyncpa [#allocation5], 0
    // Predicated region
    $region2: #{tpu_custom_call.1} parent=1 // pred_check
      _
    $region3: #{tpu_custom_call.1} parent=1 // pred_check_branch
      %9 = sbr.rel (0) target = $region5
    $region4: #{tpu_custom_call.1} parent=1 // pred_region
      %s11 = ssub.s32 256, 256
      %12 = vsyncadd [#allocation4], %s11
      %s13 = sshll.u32 [#allocation3], 4
      %s14 = int_to_ptr.vmem [resolvable:$true] %s13
      %19 = dma.hbm_to_vmem [thread:$0]  %s0, 256, %s14, [#allocation4], 128, 128, 8
    $region5: #{tpu_custom_call.1} parent=1 // pred_fallthru
      _
    // Predicated region
    $region6: #{tpu_custom_call.1} parent=1 // pred_check
      _
    $region7: #{tpu_custom_call.1} parent=1 // pred_check_branch
      %21 = sbr.rel (0) target = $region9
    $region8: #{tpu_custom_call.1} parent=1 // pred_region
      %22 = dma.done [#allocation4], 256
    $region9: #{tpu_custom_call.1} parent=1 // pred_fallthru
      _
    %v23 = vlaneseq
    %v24 = vshrl.u32 %v23, 7
    %v25 = vadd.s32 %v24, 8
    %v26 = vlaneseq
    %v27 = vand.u32 %v26, 127
    %vm28 = vcmp.eq.s32.totalorder %v24, %v27
    %vm29 = vcmp.eq.s32.totalorder %v25, %v27
    %v30 = vsel %vm28, 1, 0
    %v31 = vsel %vm29, 1, 0
    %v32 = vcvt.s32.f32 %v30
    %v33 = vcvt.s32.f32 %v31
    %v34 = vld [vmem:[#allocation3] sm:$0xff]
    %v35 = vld [vmem:[#allocation3 + $0x8] sm:$0xff]
    %38 = vrot.lane.b32.xlu0 %v32, 16
    %v39 = vpop.permute.xlu0 %38
    %40 = vrot.lane.b32.xlu0 %v33, 16
    %v41 = vpop.permute.xlu0 %40
    %vm44 = vcmask 130048
    %v45 = vsel %vm44, %v34, %v39
    %v46 = vsel %vm44, %v35, %v41
    %vm47 = vcmask 261120
    %48 = vst.msk [vmem:[#allocation2] sm:$0xff] %vm47, %v45
    %49 = vst.msk [vmem:[#allocation2 + $0x8] sm:$0xff] %vm47, %v46
    %v50 = vld [vmem:[#allocation2] sm:$0x1]
    %vm51 = vcmp.eq.s32.totalorder %v27, 0
    %v52 = vsel %vm51, %v50, 0.0
    %vm53 = vcmask 253952
    %v54 = vsel %vm53, %v52, 0.0
    %55 = vadd.xlane.f32.xlu0 %v54
    %v56 = vpop.xlane.xlu0 %55
    %v57 = vrot.slane %v56, 4
    %v58 = vadd.f32 %v56, %v57
    %v59 = vrot.slane %v58, 2
    %v60 = vadd.f32 %v58, %v59
    %v61 = vrot.slane %v60, 1
    %v62 = vadd.f32 %v60, %v61
    %s63 = vtos %v62
    %v64 = vstv %s63
    %v65 = vrcp.pop %v64
    %s66 = vtos %v65
    %v67 = vstv %s66
    %v68 = vmul.f32 %v50, %v67
    %v69 = vld [vmem:[#allocation2] sm:$0xff]
    %v70 = vld [vmem:[#allocation2 + $0x8] sm:$0xff]
    %v71 = vsel %vm51, 1, 0
    %vm72 = vcmp.eq.s32.totalorder %v71, 1
    %v73 = vsel %vm72, %v69, 0.0
    %v74 = vsel %vm72, %v70, 0.0
    %v75 = vsel %vm44, %v73, 0.0
    %76 = vadd.xlane.f32.xlu0 %v75
    %v77 = vpop.xlane.xlu0 %76
    %v78 = vsel %vm44, %v74, 0.0
    %79 = vadd.xlane.f32.xlu0 %v78
    %v80 = vpop.xlane.xlu0 %79
    %vm81 = vcmp.eq.s32.totalorder %v24, 0
    %vm82 = vcmp.eq.s32.totalorder %v25, 0
    %v83 = vsel %vm81, 0.0, %v77
    %v84 = vsel %vm82, 0.0, %v80
    %v85 = vlaneseq
    %v86 = vshrl.u32 %v85, 7
    %v87 = vsub.s32 0, %v86
    %v88 = vrot.slane %v68, %v87
    %v89 = vmul.f32 %v83, %v88
    %v90 = vmul.f32 %v84, %v88
    %v91 = vsub.f32 %v69, %v89
    %v92 = vsub.f32 %v70, %v90
    %93 = vst.msk [vmem:[#allocation2] sm:$0xff] %vm47, %v91
    %94 = vst.msk [vmem:[#allocation2 + $0x8] sm:$0xff] %vm47, %v92
    %95 = vst.msk [vmem:[#allocation2] sm:$0x1] %vm53, %v68
    %v96 = vld [vmem:[#allocation2 + $0x1] sm:$0x1]
    %vm97 = vcmp.eq.s32.totalorder %v27, 1
    %v98 = vsel %vm97, %v96, 0.0
    %v99 = vsel %vm53, %v98, 0.0
    %100 = vadd.xlane.f32.xlu0 %v99
    %v101 = vpop.xlane.xlu0 %100
    %v102 = vrot.slane %v101, 4
    %v103 = vadd.f32 %v101, %v102
    %v104 = vrot.slane %v103, 2
    %v105 = vadd.f32 %v103, %v104
    %v106 = vrot.slane %v105, 1
    %v107 = vadd.f32 %v105, %v106
    %s108 = vtos %v107
    %v109 = vstv %s108
    %v110 = vrcp.pop %v109
    %s111 = vtos %v110
    %v112 = vstv %s111
    %v113 = vmul.f32 %v96, %v112
    %v114 = vld [vmem:[#allocation2] sm:$0xff]
    %v115 = vld [vmem:[#allocation2 + $0x8] sm:$0xff]
    %v116 = vsel %vm97, 1, 0
    %vm117 = vcmp.eq.s32.totalorder %v116, 1
    %v118 = vsel %vm117, %v114, 0.0
    %v119 = vsel %vm117, %v115, 0.0
    %v120 = vsel %vm44, %v118, 0.0
    %121 = vadd.xlane.f32.xlu0 %v120
    %v122 = vpop.xlane.xlu0 %121
    %v123 = vsel %vm44, %v119, 0.0
    %124 = vadd.xlane.f32.xlu0 %v123
    %v125 = vpop.xlane.xlu0 %124
    %vm126 = vcmp.eq.s32.totalorder %v24, 1
    %vm127 = vcmp.eq.s32.totalorder %v25, 1
    %v128 = vsel %vm126, 0.0, %v122
    %v129 = vsel %vm127, 0.0, %v125
    %v130 = vlaneseq
    %v131 = vshrl.u32 %v130, 7
    %v132 = vsub.s32 0, %v131
    %v133 = vrot.slane %v113, %v132
    %v134 = vmul.f32 %v128, %v133
    %v135 = vmul.f32 %v129, %v133
    %v136 = vsub.f32 %v114, %v134
    %v137 = vsub.f32 %v115, %v135
    %138 = vst.msk [vmem:[#allocation2] sm:$0xff] %vm47, %v136
    %139 = vst.msk [vmem:[#allocation2 + $0x8] sm:$0xff] %vm47, %v137
    %140 = vst.msk [vmem:[#allocation2 + $0x1] sm:$0x1] %vm53, %v113
    %v141 = vld [vmem:[#allocation2 + $0x2] sm:$0x1]
    %vm142 = vcmp.eq.s32.totalorder %v27, 2
    %v143 = vsel %vm142, %v141, 0.0
    %v144 = vsel %vm53, %v143, 0.0
    %145 = vadd.xlane.f32.xlu0 %v144
    %v146 = vpop.xlane.xlu0 %145
    %v147 = vrot.slane %v146, 4
    %v148 = vadd.f32 %v146, %v147
    %v149 = vrot.slane %v148, 2
    %v150 = vadd.f32 %v148, %v149
    %v151 = vrot.slane %v150, 1
    %v152 = vadd.f32 %v150, %v151
    %s153 = vtos %v152
    %v154 = vstv %s153
    %v155 = vrcp.pop %v154
    %s156 = vtos %v155
    %v157 = vstv %s156
    %v158 = vmul.f32 %v141, %v157
    %v159 = vld [vmem:[#allocation2] sm:$0xff]
    %v160 = vld [vmem:[#allocation2 + $0x8] sm:$0xff]
    %v161 = vsel %vm142, 1, 0
    %vm162 = vcmp.eq.s32.totalorder %v161, 1
    %v163 = vsel %vm162, %v159, 0.0
    %v164 = vsel %vm162, %v160, 0.0
    %v165 = vsel %vm44, %v163, 0.0
    %166 = vadd.xlane.f32.xlu0 %v165
    %v167 = vpop.xlane.xlu0 %166
    %v168 = vsel %vm44, %v164, 0.0
    %169 = vadd.xlane.f32.xlu0 %v168
    %v170 = vpop.xlane.xlu0 %169
    %vm171 = vcmp.eq.s32.totalorder %v24, 2
    %vm172 = vcmp.eq.s32.totalorder %v25, 2
    %v173 = vsel %vm171, 0.0, %v167
    %v174 = vsel %vm172, 0.0, %v170
    %v175 = vlaneseq
    %v176 = vshrl.u32 %v175, 7
    %v177 = vsub.s32 0, %v176
    %v178 = vrot.slane %v158, %v177
    %v179 = vmul.f32 %v173, %v178
    %v180 = vmul.f32 %v174, %v178
    %v181 = vsub.f32 %v159, %v179
    %v182 = vsub.f32 %v160, %v180
    %183 = vst.msk [vmem:[#allocation2] sm:$0xff] %vm47, %v181
    %184 = vst.msk [vmem:[#allocation2 + $0x8] sm:$0xff] %vm47, %v182
    %185 = vst.msk [vmem:[#allocation2 + $0x2] sm:$0x1] %vm53, %v158
    %v186 = vld [vmem:[#allocation2 + $0x3] sm:$0x1]
    %vm187 = vcmp.eq.s32.totalorder %v27, 3
    %v188 = vsel %vm187, %v186, 0.0
    %v189 = vsel %vm53, %v188, 0.0
    %190 = vadd.xlane.f32.xlu0 %v189
    %v191 = vpop.xlane.xlu0 %190
    %v192 = vrot.slane %v191, 4
    %v193 = vadd.f32 %v191, %v192
    %v194 = vrot.slane %v193, 2
    %v195 = vadd.f32 %v193, %v194
    %v196 = vrot.slane %v195, 1
    %v197 = vadd.f32 %v195, %v196
    %s198 = vtos %v197
    %v199 = vstv %s198
    %v200 = vrcp.pop %v199
    %s201 = vtos %v200
    %v202 = vstv %s201
    %v203 = vmul.f32 %v186, %v202
    %v204 = vld [vmem:[#allocation2] sm:$0xff]
    %v205 = vld [vmem:[#allocation2 + $0x8] sm:$0xff]
    %v206 = vsel %vm187, 1, 0
    %vm207 = vcmp.eq.s32.totalorder %v206, 1
    %v208 = vsel %vm207, %v204, 0.0
    %v209 = vsel %vm207, %v205, 0.0
    %v210 = vsel %vm44, %v208, 0.0
    %211 = vadd.xlane.f32.xlu0 %v210
    %v212 = vpop.xlane.xlu0 %211
    %v213 = vsel %vm44, %v209, 0.0
    %214 = vadd.xlane.f32.xlu0 %v213
    %v215 = vpop.xlane.xlu0 %214
    %vm216 = vcmp.eq.s32.totalorder %v24, 3
    %vm217 = vcmp.eq.s32.totalorder %v25, 3
    %v218 = vsel %vm216, 0.0, %v212
    %v219 = vsel %vm217, 0.0, %v215
    %v220 = vlaneseq
    %v221 = vshrl.u32 %v220, 7
    %v222 = vsub.s32 0, %v221
    %v223 = vrot.slane %v203, %v222
    %v224 = vmul.f32 %v218, %v223
    %v225 = vmul.f32 %v219, %v223
    %v226 = vsub.f32 %v204, %v224
    %v227 = vsub.f32 %v205, %v225
    %228 = vst.msk [vmem:[#allocation2] sm:$0xff] %vm47, %v226
    %229 = vst.msk [vmem:[#allocation2 + $0x8] sm:$0xff] %vm47, %v227
    %230 = vst.msk [vmem:[#allocation2 + $0x3] sm:$0x1] %vm53, %v203
    %v231 = vld [vmem:[#allocation2 + $0x4] sm:$0x1]
    %vm232 = vcmp.eq.s32.totalorder %v27, 4
    %v233 = vsel %vm232, %v231, 0.0
    %v234 = vsel %vm53, %v233, 0.0
    %235 = vadd.xlane.f32.xlu0 %v234
    %v236 = vpop.xlane.xlu0 %235
    %v237 = vrot.slane %v236, 4
    %v238 = vadd.f32 %v236, %v237
    %v239 = vrot.slane %v238, 2
    %v240 = vadd.f32 %v238, %v239
    %v241 = vrot.slane %v240, 1
    %v242 = vadd.f32 %v240, %v241
    %s243 = vtos %v242
    %v244 = vstv %s243
    %v245 = vrcp.pop %v244
    %s246 = vtos %v245
    %v247 = vstv %s246
    %v248 = vmul.f32 %v231, %v247
    %v249 = vld [vmem:[#allocation2] sm:$0xff]
    %v250 = vld [vmem:[#allocation2 + $0x8] sm:$0xff]
    %v251 = vsel %vm232, 1, 0
    %vm252 = vcmp.eq.s32.totalorder %v251, 1
    %v253 = vsel %vm252, %v249, 0.0
    %v254 = vsel %vm252, %v250, 0.0
    %v255 = vsel %vm44, %v253, 0.0
    %256 = vadd.xlane.f32.xlu0 %v255
    %v257 = vpop.xlane.xlu0 %256
    %v258 = vsel %vm44, %v254, 0.0
    %259 = vadd.xlane.f32.xlu0 %v258
    %v260 = vpop.xlane.xlu0 %259
    %vm261 = vcmp.eq.s32.totalorder %v24, 4
    %vm262 = vcmp.eq.s32.totalorder %v25, 4
    %v263 = vsel %vm261, 0.0, %v257
    %v264 = vsel %vm262, 0.0, %v260
    %v265 = vlaneseq
    %v266 = vshrl.u32 %v265, 7
    %v267 = vsub.s32 0, %v266
    %v268 = vrot.slane %v248, %v267
    %v269 = vmul.f32 %v263, %v268
    %v270 = vmul.f32 %v264, %v268
    %v271 = vsub.f32 %v249, %v269
    %v272 = vsub.f32 %v250, %v270
    %273 = vst.msk [vmem:[#allocation2] sm:$0xff] %vm47, %v271
    %274 = vst.msk [vmem:[#allocation2 + $0x8] sm:$0xff] %vm47, %v272
    %275 = vst.msk [vmem:[#allocation2 + $0x4] sm:$0x1] %vm53, %v248
    %v276 = vld [vmem:[#allocation2 + $0x5] sm:$0x1]
    %vm277 = vcmp.eq.s32.totalorder %v27, 5
    %v278 = vsel %vm277, %v276, 0.0
    %v279 = vsel %vm53, %v278, 0.0
    %280 = vadd.xlane.f32.xlu0 %v279
    %v281 = vpop.xlane.xlu0 %280
    %v282 = vrot.slane %v281, 4
    %v283 = vadd.f32 %v281, %v282
    %v284 = vrot.slane %v283, 2
    %v285 = vadd.f32 %v283, %v284
    %v286 = vrot.slane %v285, 1
    %v287 = vadd.f32 %v285, %v286
    %s288 = vtos %v287
    %v289 = vstv %s288
    %v290 = vrcp.pop %v289
    %s291 = vtos %v290
    %v292 = vstv %s291
    %v293 = vmul.f32 %v276, %v292
    %v294 = vld [vmem:[#allocation2] sm:$0xff]
    %v295 = vld [vmem:[#allocation2 + $0x8] sm:$0xff]
    %v296 = vsel %vm277, 1, 0
    %vm297 = vcmp.eq.s32.totalorder %v296, 1
    %v298 = vsel %vm297, %v294, 0.0
    %v299 = vsel %vm297, %v295, 0.0
    %v300 = vsel %vm44, %v298, 0.0
    %301 = vadd.xlane.f32.xlu0 %v300
    %v302 = vpop.xlane.xlu0 %301
    %v303 = vsel %vm44, %v299, 0.0
    %304 = vadd.xlane.f32.xlu0 %v303
    %v305 = vpop.xlane.xlu0 %304
    %vm306 = vcmp.eq.s32.totalorder %v24, 5
    %vm307 = vcmp.eq.s32.totalorder %v25, 5
    %v308 = vsel %vm306, 0.0, %v302
    %v309 = vsel %vm307, 0.0, %v305
    %v310 = vlaneseq
    %v311 = vshrl.u32 %v310, 7
    %v312 = vsub.s32 0, %v311
    %v313 = vrot.slane %v293, %v312
    %v314 = vmul.f32 %v308, %v313
    %v315 = vmul.f32 %v309, %v313
    %v316 = vsub.f32 %v294, %v314
    %v317 = vsub.f32 %v295, %v315
    %318 = vst.msk [vmem:[#allocation2] sm:$0xff] %vm47, %v316
    %319 = vst.msk [vmem:[#allocation2 + $0x8] sm:$0xff] %vm47, %v317
    %320 = vst.msk [vmem:[#allocation2 + $0x5] sm:$0x1] %vm53, %v293
    %v321 = vld [vmem:[#allocation2 + $0x6] sm:$0x1]
    %vm322 = vcmp.eq.s32.totalorder %v27, 6
    %v323 = vsel %vm322, %v321, 0.0
    %v324 = vsel %vm53, %v323, 0.0
    %325 = vadd.xlane.f32.xlu0 %v324
    %v326 = vpop.xlane.xlu0 %325
    %v327 = vrot.slane %v326, 4
    %v328 = vadd.f32 %v326, %v327
    %v329 = vrot.slane %v328, 2
    %v330 = vadd.f32 %v328, %v329
    %v331 = vrot.slane %v330, 1
    %v332 = vadd.f32 %v330, %v331
    %s333 = vtos %v332
    %v334 = vstv %s333
    %v335 = vrcp.pop %v334
    %s336 = vtos %v335
    %v337 = vstv %s336
    %v338 = vmul.f32 %v321, %v337
    %v339 = vld [vmem:[#allocation2] sm:$0xff]
    %v340 = vld [vmem:[#allocation2 + $0x8] sm:$0xff]
    %v341 = vsel %vm322, 1, 0
    %vm342 = vcmp.eq.s32.totalorder %v341, 1
    %v343 = vsel %vm342, %v339, 0.0
    %v344 = vsel %vm342, %v340, 0.0
    %v345 = vsel %vm44, %v343, 0.0
    %346 = vadd.xlane.f32.xlu0 %v345
    %v347 = vpop.xlane.xlu0 %346
    %v348 = vsel %vm44, %v344, 0.0
    %349 = vadd.xlane.f32.xlu0 %v348
    %v350 = vpop.xlane.xlu0 %349
    %vm351 = vcmp.eq.s32.totalorder %v24, 6
    %vm352 = vcmp.eq.s32.totalorder %v25, 6
    %v353 = vsel %vm351, 0.0, %v347
    %v354 = vsel %vm352, 0.0, %v350
    %v355 = vlaneseq
    %v356 = vshrl.u32 %v355, 7
    %v357 = vsub.s32 0, %v356
    %v358 = vrot.slane %v338, %v357
    %v359 = vmul.f32 %v353, %v358
    %v360 = vmul.f32 %v354, %v358
    %v361 = vsub.f32 %v339, %v359
    %v362 = vsub.f32 %v340, %v360
    %363 = vst.msk [vmem:[#allocation2] sm:$0xff] %vm47, %v361
    %364 = vst.msk [vmem:[#allocation2 + $0x8] sm:$0xff] %vm47, %v362
    %365 = vst.msk [vmem:[#allocation2 + $0x6] sm:$0x1] %vm53, %v338
    %v366 = vld [vmem:[#allocation2 + $0x7] sm:$0x1]
    %vm367 = vcmp.eq.s32.totalorder %v27, 7
    %v368 = vsel %vm367, %v366, 0.0
    %v369 = vsel %vm53, %v368, 0.0
    %370 = vadd.xlane.f32.xlu0 %v369
    %v371 = vpop.xlane.xlu0 %370
    %v372 = vrot.slane %v371, 4
    %v373 = vadd.f32 %v371, %v372
    %v374 = vrot.slane %v373, 2
    %v375 = vadd.f32 %v373, %v374
    %v376 = vrot.slane %v375, 1
    %v377 = vadd.f32 %v375, %v376
    %s378 = vtos %v377
    %v379 = vstv %s378
    %v380 = vrcp.pop %v379
    %s381 = vtos %v380
    %v382 = vstv %s381
    %v383 = vmul.f32 %v366, %v382
    %v384 = vld [vmem:[#allocation2] sm:$0xff]
    %v385 = vld [vmem:[#allocation2 + $0x8] sm:$0xff]
    %v386 = vsel %vm367, 1, 0
    %vm387 = vcmp.eq.s32.totalorder %v386, 1
    %v388 = vsel %vm387, %v384, 0.0
    %v389 = vsel %vm387, %v385, 0.0
    %v390 = vsel %vm44, %v388, 0.0
    %391 = vadd.xlane.f32.xlu0 %v390
    %v392 = vpop.xlane.xlu0 %391
    %v393 = vsel %vm44, %v389, 0.0
    %394 = vadd.xlane.f32.xlu0 %v393
    %v395 = vpop.xlane.xlu0 %394
    %vm396 = vcmp.eq.s32.totalorder %v24, 7
    %vm397 = vcmp.eq.s32.totalorder %v25, 7
    %v398 = vsel %vm396, 0.0, %v392
    %v399 = vsel %vm397, 0.0, %v395
    %v400 = vlaneseq
    %v401 = vshrl.u32 %v400, 7
    %v402 = vsub.s32 0, %v401
    %v403 = vrot.slane %v383, %v402
    %v404 = vmul.f32 %v398, %v403
    %v405 = vmul.f32 %v399, %v403
    %v406 = vsub.f32 %v384, %v404
    %v407 = vsub.f32 %v385, %v405
    %408 = vst.msk [vmem:[#allocation2] sm:$0xff] %vm47, %v406
    %409 = vst.msk [vmem:[#allocation2 + $0x8] sm:$0xff] %vm47, %v407
    %410 = vst.msk [vmem:[#allocation2 + $0x7] sm:$0x1] %vm53, %v383
    %v411 = vld [vmem:[#allocation2 + $0x8] sm:$0x1]
    %vm412 = vcmp.eq.s32.totalorder %v27, 8
    %v413 = vsel %vm412, %v411, 0.0
    %v414 = vsel %vm53, %v413, 0.0
    %415 = vadd.xlane.f32.xlu0 %v414
    %v416 = vpop.xlane.xlu0 %415
    %v417 = vrot.slane %v416, 4
    %v418 = vadd.f32 %v416, %v417
    %v419 = vrot.slane %v418, 2
    %v420 = vadd.f32 %v418, %v419
    %v421 = vrot.slane %v420, 1
    %v422 = vadd.f32 %v420, %v421
    %s423 = vtos %v422
    %v424 = vstv %s423
    %v425 = vrcp.pop %v424
    %s426 = vtos %v425
    %v427 = vstv %s426
    %v428 = vmul.f32 %v411, %v427
    %v429 = vld [vmem:[#allocation2] sm:$0xff]
    %v430 = vld [vmem:[#allocation2 + $0x8] sm:$0xff]
    %v431 = vsel %vm412, 1, 0
    %vm432 = vcmp.eq.s32.totalorder %v431, 1
    %v433 = vsel %vm432, %v429, 0.0
    %v434 = vsel %vm432, %v430, 0.0
    %v435 = vsel %vm44, %v433, 0.0
    %436 = vadd.xlane.f32.xlu0 %v435
    %v437 = vpop.xlane.xlu0 %436
    %v438 = vsel %vm44, %v434, 0.0
    %439 = vadd.xlane.f32.xlu0 %v438
    %v440 = vpop.xlane.xlu0 %439
    %vm441 = vcmp.eq.s32.totalorder %v24, 8
    %vm442 = vcmp.eq.s32.totalorder %v25, 8
    %v443 = vsel %vm441, 0.0, %v437
    %v444 = vsel %vm442, 0.0, %v440
    %v445 = vlaneseq
    %v446 = vshrl.u32 %v445, 7
    %v447 = vsub.s32 0, %v446
    %v448 = vrot.slane %v428, %v447
    %v449 = vmul.f32 %v443, %v448
    %v450 = vmul.f32 %v444, %v448
    %v451 = vsub.f32 %v429, %v449
    %v452 = vsub.f32 %v430, %v450
    %453 = vst.msk [vmem:[#allocation2] sm:$0xff] %vm47, %v451
    %454 = vst.msk [vmem:[#allocation2 + $0x8] sm:$0xff] %vm47, %v452
    %455 = vst.msk [vmem:[#allocation2 + $0x8] sm:$0x1] %vm53, %v428
    %v456 = vld [vmem:[#allocation2 + $0x9] sm:$0x1]
    %vm457 = vcmp.eq.s32.totalorder %v27, 9
    %v458 = vsel %vm457, %v456, 0.0
    %v459 = vsel %vm53, %v458, 0.0
    %460 = vadd.xlane.f32.xlu0 %v459
    %v461 = vpop.xlane.xlu0 %460
    %v462 = vrot.slane %v461, 4
    %v463 = vadd.f32 %v461, %v462
    %v464 = vrot.slane %v463, 2
    %v465 = vadd.f32 %v463, %v464
    %v466 = vrot.slane %v465, 1
    %v467 = vadd.f32 %v465, %v466
    %s468 = vtos %v467
    %v469 = vstv %s468
    %v470 = vrcp.pop %v469
    %s471 = vtos %v470
    %v472 = vstv %s471
    %v473 = vmul.f32 %v456, %v472
    %v474 = vld [vmem:[#allocation2] sm:$0xff]
    %v475 = vld [vmem:[#allocation2 + $0x8] sm:$0xff]
    %v476 = vsel %vm457, 1, 0
    %vm477 = vcmp.eq.s32.totalorder %v476, 1
    %v478 = vsel %vm477, %v474, 0.0
    %v479 = vsel %vm477, %v475, 0.0
    %v480 = vsel %vm44, %v478, 0.0
    %481 = vadd.xlane.f32.xlu0 %v480
    %v482 = vpop.xlane.xlu0 %481
    %v483 = vsel %vm44, %v479, 0.0
    %484 = vadd.xlane.f32.xlu0 %v483
    %v485 = vpop.xlane.xlu0 %484
    %vm486 = vcmp.eq.s32.totalorder %v24, 9
    %vm487 = vcmp.eq.s32.totalorder %v25, 9
    %v488 = vsel %vm486, 0.0, %v482
    %v489 = vsel %vm487, 0.0, %v485
    %v490 = vlaneseq
    %v491 = vshrl.u32 %v490, 7
    %v492 = vsub.s32 0, %v491
    %v493 = vrot.slane %v473, %v492
    %v494 = vmul.f32 %v488, %v493
    %v495 = vmul.f32 %v489, %v493
    %v496 = vsub.f32 %v474, %v494
    %v497 = vsub.f32 %v475, %v495
    %498 = vst.msk [vmem:[#allocation2] sm:$0xff] %vm47, %v496
    %499 = vst.msk [vmem:[#allocation2 + $0x8] sm:$0xff] %vm47, %v497
    %500 = vst.msk [vmem:[#allocation2 + $0x9] sm:$0x1] %vm53, %v473
    %v501 = vld [vmem:[#allocation2 + $0xa] sm:$0x1]
    %vm502 = vcmp.eq.s32.totalorder %v27, 10
    %v503 = vsel %vm502, %v501, 0.0
    %v504 = vsel %vm53, %v503, 0.0
    %505 = vadd.xlane.f32.xlu0 %v504
    %v506 = vpop.xlane.xlu0 %505
    %v507 = vrot.slane %v506, 4
    %v508 = vadd.f32 %v506, %v507
    %v509 = vrot.slane %v508, 2
    %v510 = vadd.f32 %v508, %v509
    %v511 = vrot.slane %v510, 1
    %v512 = vadd.f32 %v510, %v511
    %s513 = vtos %v512
    %v514 = vstv %s513
    %v515 = vrcp.pop %v514
    %s516 = vtos %v515
    %v517 = vstv %s516
    %v518 = vmul.f32 %v501, %v517
    %v519 = vld [vmem:[#allocation2] sm:$0xff]
    %v520 = vld [vmem:[#allocation2 + $0x8] sm:$0xff]
    %v521 = vsel %vm502, 1, 0
    %vm522 = vcmp.eq.s32.totalorder %v521, 1
    %v523 = vsel %vm522, %v519, 0.0
    %v524 = vsel %vm522, %v520, 0.0
    %v525 = vsel %vm44, %v523, 0.0
    %526 = vadd.xlane.f32.xlu0 %v525
    %v527 = vpop.xlane.xlu0 %526
    %v528 = vsel %vm44, %v524, 0.0
    %529 = vadd.xlane.f32.xlu0 %v528
    %v530 = vpop.xlane.xlu0 %529
    %vm531 = vcmp.eq.s32.totalorder %v24, 10
    %vm532 = vcmp.eq.s32.totalorder %v25, 10
    %v533 = vsel %vm531, 0.0, %v527
    %v534 = vsel %vm532, 0.0, %v530
    %v535 = vlaneseq
    %v536 = vshrl.u32 %v535, 7
    %v537 = vsub.s32 0, %v536
    %v538 = vrot.slane %v518, %v537
    %v539 = vmul.f32 %v533, %v538
    %v540 = vmul.f32 %v534, %v538
    %v541 = vsub.f32 %v519, %v539
    %v542 = vsub.f32 %v520, %v540
    %543 = vst.msk [vmem:[#allocation2] sm:$0xff] %vm47, %v541
    %544 = vst.msk [vmem:[#allocation2 + $0x8] sm:$0xff] %vm47, %v542
    %545 = vst.msk [vmem:[#allocation2 + $0xa] sm:$0x1] %vm53, %v518
    %v546 = vld [vmem:[#allocation2 + $0xb] sm:$0x1]
    %vm547 = vcmp.eq.s32.totalorder %v27, 11
    %v548 = vsel %vm547, %v546, 0.0
    %v549 = vsel %vm53, %v548, 0.0
    %550 = vadd.xlane.f32.xlu0 %v549
    %v551 = vpop.xlane.xlu0 %550
    %v552 = vrot.slane %v551, 4
    %v553 = vadd.f32 %v551, %v552
    %v554 = vrot.slane %v553, 2
    %v555 = vadd.f32 %v553, %v554
    %v556 = vrot.slane %v555, 1
    %v557 = vadd.f32 %v555, %v556
    %s558 = vtos %v557
    %v559 = vstv %s558
    %v560 = vrcp.pop %v559
    %s561 = vtos %v560
    %v562 = vstv %s561
    %v563 = vmul.f32 %v546, %v562
    %v564 = vld [vmem:[#allocation2] sm:$0xff]
    %v565 = vld [vmem:[#allocation2 + $0x8] sm:$0xff]
    %v566 = vsel %vm547, 1, 0
    %vm567 = vcmp.eq.s32.totalorder %v566, 1
    %v568 = vsel %vm567, %v564, 0.0
    %v569 = vsel %vm567, %v565, 0.0
    %v570 = vsel %vm44, %v568, 0.0
    %571 = vadd.xlane.f32.xlu0 %v570
    %v572 = vpop.xlane.xlu0 %571
    %v573 = vsel %vm44, %v569, 0.0
    %574 = vadd.xlane.f32.xlu0 %v573
    %v575 = vpop.xlane.xlu0 %574
    %vm576 = vcmp.eq.s32.totalorder %v24, 11
    %vm577 = vcmp.eq.s32.totalorder %v25, 11
    %v578 = vsel %vm576, 0.0, %v572
    %v579 = vsel %vm577, 0.0, %v575
    %v580 = vlaneseq
    %v581 = vshrl.u32 %v580, 7
    %v582 = vsub.s32 0, %v581
    %v583 = vrot.slane %v563, %v582
    %v584 = vmul.f32 %v578, %v583
    %v585 = vmul.f32 %v579, %v583
    %v586 = vsub.f32 %v564, %v584
    %v587 = vsub.f32 %v565, %v585
    %588 = vst.msk [vmem:[#allocation2] sm:$0xff] %vm47, %v586
    %589 = vst.msk [vmem:[#allocation2 + $0x8] sm:$0xff] %vm47, %v587
    %590 = vst.msk [vmem:[#allocation2 + $0xb] sm:$0x1] %vm53, %v563
    %v591 = vld [vmem:[#allocation2 + $0xc] sm:$0x1]
    %vm592 = vcmp.eq.s32.totalorder %v27, 12
    %v593 = vsel %vm592, %v591, 0.0
    %v594 = vsel %vm53, %v593, 0.0
    %595 = vadd.xlane.f32.xlu0 %v594
    %v596 = vpop.xlane.xlu0 %595
    %v597 = vrot.slane %v596, 4
    %v598 = vadd.f32 %v596, %v597
    %v599 = vrot.slane %v598, 2
    %v600 = vadd.f32 %v598, %v599
    %v601 = vrot.slane %v600, 1
    %v602 = vadd.f32 %v600, %v601
    %s603 = vtos %v602
    %v604 = vstv %s603
    %v605 = vrcp.pop %v604
    %s606 = vtos %v605
    %v607 = vstv %s606
    %v608 = vmul.f32 %v591, %v607
    %v609 = vld [vmem:[#allocation2] sm:$0xff]
    %v610 = vld [vmem:[#allocation2 + $0x8] sm:$0xff]
    %v611 = vsel %vm592, 1, 0
    %vm612 = vcmp.eq.s32.totalorder %v611, 1
    %v613 = vsel %vm612, %v609, 0.0
    %v614 = vsel %vm612, %v610, 0.0
    %v615 = vsel %vm44, %v613, 0.0
    %616 = vadd.xlane.f32.xlu0 %v615
    %v617 = vpop.xlane.xlu0 %616
    %v618 = vsel %vm44, %v614, 0.0
    %619 = vadd.xlane.f32.xlu0 %v618
    %v620 = vpop.xlane.xlu0 %619
    %vm621 = vcmp.eq.s32.totalorder %v24, 12
    %vm622 = vcmp.eq.s32.totalorder %v25, 12
    %v623 = vsel %vm621, 0.0, %v617
    %v624 = vsel %vm622, 0.0, %v620
    %v625 = vlaneseq
    %v626 = vshrl.u32 %v625, 7
    %v627 = vsub.s32 0, %v626
    %v628 = vrot.slane %v608, %v627
    %v629 = vmul.f32 %v623, %v628
    %v630 = vmul.f32 %v624, %v628
    %v631 = vsub.f32 %v609, %v629
    %v632 = vsub.f32 %v610, %v630
    %633 = vst.msk [vmem:[#allocation2] sm:$0xff] %vm47, %v631
    %634 = vst.msk [vmem:[#allocation2 + $0x8] sm:$0xff] %vm47, %v632
    %635 = vst.msk [vmem:[#allocation2 + $0xc] sm:$0x1] %vm53, %v608
    %v636 = vld [vmem:[#allocation2 + $0xd] sm:$0x1]
    %vm637 = vcmp.eq.s32.totalorder %v27, 13
    %v638 = vsel %vm637, %v636, 0.0
    %v639 = vsel %vm53, %v638, 0.0
    %640 = vadd.xlane.f32.xlu0 %v639
    %v641 = vpop.xlane.xlu0 %640
    %v642 = vrot.slane %v641, 4
    %v643 = vadd.f32 %v641, %v642
    %v644 = vrot.slane %v643, 2
    %v645 = vadd.f32 %v643, %v644
    %v646 = vrot.slane %v645, 1
    %v647 = vadd.f32 %v645, %v646
    %s648 = vtos %v647
    %v649 = vstv %s648
    %v650 = vrcp.pop %v649
    %s651 = vtos %v650
    %v652 = vstv %s651
    %v653 = vmul.f32 %v636, %v652
    %v654 = vld [vmem:[#allocation2] sm:$0xff]
    %v655 = vld [vmem:[#allocation2 + $0x8] sm:$0xff]
    %v656 = vsel %vm637, 1, 0
    %vm657 = vcmp.eq.s32.totalorder %v656, 1
    %v658 = vsel %vm657, %v654, 0.0
    %v659 = vsel %vm657, %v655, 0.0
    %v660 = vsel %vm44, %v658, 0.0
    %661 = vadd.xlane.f32.xlu0 %v660
    %v662 = vpop.xlane.xlu0 %661
    %v663 = vsel %vm44, %v659, 0.0
    %664 = vadd.xlane.f32.xlu0 %v663
    %v665 = vpop.xlane.xlu0 %664
    %vm666 = vcmp.eq.s32.totalorder %v24, 13
    %vm667 = vcmp.eq.s32.totalorder %v25, 13
    %v668 = vsel %vm666, 0.0, %v662
    %v669 = vsel %vm667, 0.0, %v665
    %v670 = vlaneseq
    %v671 = vshrl.u32 %v670, 7
    %v672 = vsub.s32 0, %v671
    %v673 = vrot.slane %v653, %v672
    %v674 = vmul.f32 %v668, %v673
    %v675 = vmul.f32 %v669, %v673
    %v676 = vsub.f32 %v654, %v674
    %v677 = vsub.f32 %v655, %v675
    %678 = vst.msk [vmem:[#allocation2] sm:$0xff] %vm47, %v676
    %679 = vst.msk [vmem:[#allocation2 + $0x8] sm:$0xff] %vm47, %v677
    %680 = vst.msk [vmem:[#allocation2 + $0xd] sm:$0x1] %vm53, %v653
    %v681 = vld [vmem:[#allocation2 + $0xe] sm:$0x1]
    %vm682 = vcmp.eq.s32.totalorder %v27, 14
    %v683 = vsel %vm682, %v681, 0.0
    %v684 = vsel %vm53, %v683, 0.0
    %685 = vadd.xlane.f32.xlu0 %v684
    %v686 = vpop.xlane.xlu0 %685
    %v687 = vrot.slane %v686, 4
    %v688 = vadd.f32 %v686, %v687
    %v689 = vrot.slane %v688, 2
    %v690 = vadd.f32 %v688, %v689
    %v691 = vrot.slane %v690, 1
    %v692 = vadd.f32 %v690, %v691
    %s693 = vtos %v692
    %v694 = vstv %s693
    %v695 = vrcp.pop %v694
    %s696 = vtos %v695
    %v697 = vstv %s696
    %v698 = vmul.f32 %v681, %v697
    %v699 = vld [vmem:[#allocation2] sm:$0xff]
    %v700 = vld [vmem:[#allocation2 + $0x8] sm:$0xff]
    %v701 = vsel %vm682, 1, 0
    %vm702 = vcmp.eq.s32.totalorder %v701, 1
    %v703 = vsel %vm702, %v699, 0.0
    %v704 = vsel %vm702, %v700, 0.0
    %v705 = vsel %vm44, %v703, 0.0
    %706 = vadd.xlane.f32.xlu0 %v705
    %v707 = vpop.xlane.xlu0 %706
    %v708 = vsel %vm44, %v704, 0.0
    %709 = vadd.xlane.f32.xlu0 %v708
    %v710 = vpop.xlane.xlu0 %709
    %vm711 = vcmp.eq.s32.totalorder %v24, 14
    %vm712 = vcmp.eq.s32.totalorder %v25, 14
    %v713 = vsel %vm711, 0.0, %v707
    %v714 = vsel %vm712, 0.0, %v710
    %v715 = vlaneseq
    %v716 = vshrl.u32 %v715, 7
    %v717 = vsub.s32 0, %v716
    %v718 = vrot.slane %v698, %v717
    %v719 = vmul.f32 %v713, %v718
    %v720 = vmul.f32 %v714, %v718
    %v721 = vsub.f32 %v699, %v719
    %v722 = vsub.f32 %v700, %v720
    %723 = vst.msk [vmem:[#allocation2] sm:$0xff] %vm47, %v721
    %724 = vst.msk [vmem:[#allocation2 + $0x8] sm:$0xff] %vm47, %v722
    %725 = vst.msk [vmem:[#allocation2 + $0xe] sm:$0x1] %vm53, %v698
    %v726 = vld [vmem:[#allocation2 + $0xf] sm:$0x1]
    %vm727 = vcmp.eq.s32.totalorder %v27, 15
    %v728 = vsel %vm727, %v726, 0.0
    %v729 = vsel %vm53, %v728, 0.0
    %730 = vadd.xlane.f32.xlu0 %v729
    %v731 = vpop.xlane.xlu0 %730
    %v732 = vrot.slane %v731, 4
    %v733 = vadd.f32 %v731, %v732
    %v734 = vrot.slane %v733, 2
    %v735 = vadd.f32 %v733, %v734
    %v736 = vrot.slane %v735, 1
    %v737 = vadd.f32 %v735, %v736
    %s738 = vtos %v737
    %v739 = vstv %s738
    %v740 = vrcp.pop %v739
    %s741 = vtos %v740
    %v742 = vstv %s741
    %v743 = vmul.f32 %v726, %v742
    %v744 = vld [vmem:[#allocation2] sm:$0xff]
    %v745 = vld [vmem:[#allocation2 + $0x8] sm:$0xff]
    %v746 = vsel %vm727, 1, 0
    %vm747 = vcmp.eq.s32.totalorder %v746, 1
    %v748 = vsel %vm747, %v744, 0.0
    %v749 = vsel %vm747, %v745, 0.0
    %v750 = vsel %vm44, %v748, 0.0
    %751 = vadd.xlane.f32.xlu0 %v750
    %v752 = vpop.xlane.xlu0 %751
    %v753 = vsel %vm44, %v749, 0.0
    %754 = vadd.xlane.f32.xlu0 %v753
    %v755 = vpop.xlane.xlu0 %754
    %vm756 = vcmp.eq.s32.totalorder %v24, 15
    %vm757 = vcmp.eq.s32.totalorder %v25, 15
    %v758 = vsel %vm756, 0.0, %v752
    %v759 = vsel %vm757, 0.0, %v755
    %v760 = vlaneseq
    %v761 = vshrl.u32 %v760, 7
    %v762 = vsub.s32 0, %v761
    %v763 = vrot.slane %v743, %v762
    %v764 = vmul.f32 %v758, %v763
    %v765 = vmul.f32 %v759, %v763
    %v766 = vsub.f32 %v744, %v764
    %v767 = vsub.f32 %v745, %v765
    %768 = vst.msk [vmem:[#allocation2] sm:$0xff] %vm47, %v766
    %769 = vst.msk [vmem:[#allocation2 + $0x8] sm:$0xff] %vm47, %v767
    %770 = vst.msk [vmem:[#allocation2 + $0xf] sm:$0x1] %vm53, %v743
    %v771 = vld [vmem:[#allocation2] sm:$0xff]
    %v772 = vld [vmem:[#allocation2 + $0x8] sm:$0xff]
    %775 = vrot.lane.b32.xlu0 %v771, 112
    %v776 = vpop.permute.xlu0 %775
    %777 = vrot.lane.b32.xlu0 %v772, 112
    %v778 = vpop.permute.xlu0 %777
    %781 = vst.msk [vmem:[#allocation6] sm:$0xff] %vm44, %v776
    %782 = vst.msk [vmem:[#allocation6 + $0x8] sm:$0xff] %vm44, %v778
    // Predicated region
    $region10: #{tpu_custom_call.1} parent=1 // pred_check
      _
    $region11: #{tpu_custom_call.1} parent=1 // pred_check_branch
      %784 = sbr.rel (0) target = $region13
    $region12: #{tpu_custom_call.1} parent=1 // pred_region
      %s786 = ssub.s32 256, 256
      %787 = vsyncadd [#allocation5], %s786
      %s788 = sshll.u32 [#allocation6], 4
      %s789 = int_to_ptr.vmem [resolvable:$true] %s788
      %794 = dma.vmem_to_hbm [thread:$0]  %s789, 256, %s1, [#allocation5], 128, 128, 8
    $region13: #{tpu_custom_call.1} parent=1 // pred_fallthru
      _
    // Predicated region
    $region14: #{tpu_custom_call.1} parent=1 // pred_check
      _
    $region15: #{tpu_custom_call.1} parent=1 // pred_check_branch
      %796 = sbr.rel (0) target = $region17
    $region16: #{tpu_custom_call.1} parent=1 // pred_region
      %797 = dma.done [#allocation5], 256
    $region17: #{tpu_custom_call.1} parent=1 // pred_fallthru
      _
    %798 = vsyncpa [#allocation4], 1
    %799 = vsyncpa [#allocation5], 1

</llo_original>
